<compile_context>
chip_gen: v5e
topology: v5e:2x2
jax: 0.10.0
libtpu: 0.0.40
codegen_flags: <defaults>
</compile_context>

<pallas_src>
import math

import jax
import jax.numpy as jnp
from jax.experimental import pallas as pl
from jax.experimental.pallas import tpu as pltpu


USE_BF16_MXU = True         # bf16 MXU inputs + bf16 inter-layer activations; f32 accum/epilogue
FEATURE_DIM = 64 * 11 * 11


def round_up(x, m):
    return ((x + m - 1) // m) * m


def _num_tensorcores_per_chip():
    """How many TensorCores a 'parallel' grid axis is sharded across."""
    try:
        kind = jax.devices()[0].device_kind.lower()
    except Exception:
        return 2
    # v5e / v6e expose one TensorCore per chip; v4/v5p (megacore) and v7x two.
    if "lite" in kind or "v5e" in kind or "v6e" in kind:
        return 1
    return 2


def pick_tile_m(m, n_cores):
    # Largest tile (multiple of 8, <=512 rows) that still gives >=2 pipelined
    # grid steps per TensorCore, so the A-tile DMA overlaps compute on every
    # generation (and both v7x TCs get >=2 steps each at Atari sizes).
    min_steps = 2 * max(1, n_cores)
    tile = round_up(pl.cdiv(m, min_steps), 8)
    tile = max(8, min(512, tile))
    return min(tile, round_up(m, 8))


# ----------------------------------------------------------------------------
# Pallas kernel: matmul -> +bias -> ReLU (one M-tile per grid step)
# ----------------------------------------------------------------------------
def gemm_bias_relu_kernel(a_ref, w_ref, b_ref, o_ref):
    acc = jnp.dot(a_ref[...], w_ref[...], preferred_element_type=jnp.float32)
    acc = acc + b_ref[...]                       # f32 epilogue (v5e-safe)
    o_ref[...] = jnp.maximum(acc, 0.0).astype(o_ref.dtype)


# ----------------------------------------------------------------------------
# Glue: TF-SAME padding (reproduces Conv2d_tf._compute_padding + F.pad path)
# ----------------------------------------------------------------------------
def tf_same_pad_nhwc(x, kh, kw, stride):
    _, h, w, _ = x.shape

    def pads(size, k, s):
        out = (size + s - 1) // s
        total = max(0, (out - 1) * s + k - size)
        # Conv2d_tf: total//2 both sides, extra odd pixel on bottom/right.
        return total // 2, total - total // 2

    ph0, ph1 = pads(h, kh, stride)
    pw0, pw1 = pads(w, kw, stride)
    return jnp.pad(x, ((0, 0), (ph0, ph1), (pw0, pw1), (0, 0)))


# ----------------------------------------------------------------------------
# Glue: im2col patch extraction (flatten order = (KH, KW, Cin), Cin fastest)
# ----------------------------------------------------------------------------
def im2col_nhwc(x_pad, kh, kw, stride):
    n, hp, wp, c = x_pad.shape
    ho = (hp - kh) // stride + 1
    wo = (wp - kw) // stride + 1
    cols = []
    for i in range(kh):
        for j in range(kw):
            cols.append(
                x_pad[:, i: i + stride * ho: stride, j: j + stride * wo: stride, :]
            )  # (N, Ho, Wo, C)
    patches = jnp.stack(cols, axis=3)            # (N, Ho, Wo, KH*KW, C)
    return patches.reshape(n, ho, wo, kh * kw * c), ho, wo


# ----------------------------------------------------------------------------
# Weight prep: OIHW -> (KH*KW*Cin, Cout), no channel padding, optional scale
# fold ((A*s) @ W == A @ (W*s) exactly in math; bias untouched).
# ----------------------------------------------------------------------------
def prep_weight(w_oihw, bias, scale=1.0):
    cout, cin, kh, kw = w_oihw.shape
    w = jnp.transpose(w_oihw, (2, 3, 1, 0)) * scale          # (KH, KW, Cin, Cout)
    w2d = w.reshape(kh * kw * cin, cout)
    b2d = bias.reshape(1, cout)                               # bias stays f32
    return w2d, b2d


# ----------------------------------------------------------------------------
# One conv layer = TF-SAME pad + im2col (glue) + M-tiled Pallas GEMM kernel
# ----------------------------------------------------------------------------
def conv_layer(x_nhwc, w2d, b2d, kh, kw, stride, out_dtype, n_cores):
    x_pad = tf_same_pad_nhwc(x_nhwc, kh, kw, stride)
    patches, ho, wo = im2col_nhwc(x_pad, kh, kw, stride)
    n = x_nhwc.shape[0]
    m = n * ho * wo
    k, cout = w2d.shape
    assert k == patches.shape[-1]

    a = patches.reshape(m, k)
    tile_m = pick_tile_m(m, n_cores)
    grid_m = pl.cdiv(m, tile_m)                  # ragged last block; no A-row pad

    cost = pl.CostEstimate(
        flops=2 * m * k * cout,
        transcendentals=0,
        bytes_accessed=(m * k * a.dtype.itemsize
                        + k * cout * w2d.dtype.itemsize
                        + m * cout * jnp.dtype(out_dtype).itemsize
                        + cout * 4),
    )

    out = pl.pallas_call(
        gemm_bias_relu_kernel,
        out_shape=jax.ShapeDtypeStruct((m, cout), out_dtype),
        grid=(grid_m,),
        in_specs=[
            # A tile marches over M; K is full-extent (256/512/576).
            pl.BlockSpec((tile_m, k), lambda i: (i, 0)),
            # W/bias index_maps are constant, so the fetched block is re-used;
            # pl.Buffered(1) would also drop their second VMEM buffer, but VMEM
            # is not binding at K<=576 (review item 7) — left default for safety.
            pl.BlockSpec((k, cout), lambda i: (0, 0)),
            pl.BlockSpec((1, cout), lambda i: (0, 0)),
        ],
        out_specs=pl.BlockSpec((tile_m, cout), lambda i: (i, 0)),
        compiler_params=pltpu.CompilerParams(
            dimension_semantics=("parallel",),   # dual-TC sharding where available
        ),
        cost_estimate=cost,
    )(a, w2d, b2d)

    return out.reshape(n, ho, wo, cout)


# ----------------------------------------------------------------------------
# Encoder forward
# ----------------------------------------------------------------------------
def encoder_forward(obs_nchw, params):
    (w1, b1), (w2, b2), (w3, b3) = params
    act_dtype = jnp.bfloat16 if USE_BF16_MXU else jnp.float32
    n_cores = _num_tensorcores_per_chip()

    # Fold 1/255 into conv1's weights; no channel padding anywhere.
    w1_2d, b1_2d = prep_weight(w1, b1, scale=1.0 / 255.0)
    w2_2d, b2_2d = prep_weight(w2, b2)
    w3_2d, b3_2d = prep_weight(w3, b3)
    if USE_BF16_MXU:
        w1_2d = w1_2d.astype(jnp.bfloat16)
        w2_2d = w2_2d.astype(jnp.bfloat16)
        w3_2d = w3_2d.astype(jnp.bfloat16)

    # NCHW -> NHWC; cast before pad/im2col so patch arrays live in HBM as bf16.
    x = jnp.transpose(obs_nchw, (0, 2, 3, 1)).astype(act_dtype)
    h = conv_layer(x, w1_2d, b1_2d, 8, 8, 4, act_dtype, n_cores)      # (N,21,21,32)
    h = conv_layer(h, w2_2d, b2_2d, 4, 4, 2, act_dtype, n_cores)      # (N,11,11,64)
    h = conv_layer(h, w3_2d, b3_2d, 3, 3, 1, jnp.float32, n_cores)    # (N,11,11,64)

    # Flatten in torch NCHW order so the feature layout matches h.view(N, -1).
    h_nchw = jnp.transpose(h, (0, 3, 1, 2))
    out = h_nchw.reshape(h_nchw.shape[0], -1)
    assert out.shape[1] == FEATURE_DIM
    return out


# ----------------------------------------------------------------------------
# Deterministic parameter init (PyTorch default Conv2d init bounds)
# ----------------------------------------------------------------------------
def init_conv(key, cout, cin, k):
    fan_in = cin * k * k
    bound = 1.0 / math.sqrt(fan_in)
    kw_, kb_ = jax.random.split(key)
    w = jax.random.uniform(kw_, (cout, cin, k, k), jnp.float32, -bound, bound)
    b = jax.random.uniform(kb_, (cout,), jnp.float32, -bound, bound)
    return w, b


# ----------------------------------------------------------------------------
# Pure-JAX f32 reference (silent sanity check)
# ----------------------------------------------------------------------------
def reference_forward(obs_nchw, params):
    x = obs_nchw / 255.0

    def conv(x, w, b, stride, k):
        def pads(size, s):
            out = (size + s - 1) // s
            total = max(0, (out - 1) * s + k - size)
            return total // 2, total - total // 2

        ph = pads(x.shape[2], stride)
        pw = pads(x.shape[3], stride)
        y = jax.lax.conv_general_dilated(
            x, w, (stride, stride), (ph, pw),
            dimension_numbers=("NCHW", "OIHW", "NCHW"),
        )
        return jnp.maximum(y + b[None, :, None, None], 0.0)

    (w1, b1), (w2, b2), (w3, b3) = params
    h = conv(x, w1, b1, 4, 8)
    h = conv(h, w2, b2, 2, 4)
    h = conv(h, w3, b3, 1, 3)
    return h.reshape(h.shape[0], -1)


if __name__ == "__main__":
    key = jax.random.PRNGKey(0)
    kobs, k1, k2, k3 = jax.random.split(key, 4)

    # batch=2, frame-stack channels=4, Atari 84x84 (84x84 is required by the
    # module's feature_dim == 64*11*11 assertion).
    N, C, H, W = 2, 4, 84, 84
    obs = jax.random.uniform(kobs, (N, C, H, W), jnp.float32, 0.0, 255.0)

    params = (
        init_conv(k1, 32, C, 8),
        init_conv(k2, 64, 32, 4),
        init_conv(k3, 64, 64, 3),
    )

    fwd = jax.jit(encoder_forward)
    out = jax.block_until_ready(fwd(obs, params))

    ref = jax.block_until_ready(reference_forward(obs, params))
    assert out.shape == (N, FEATURE_DIM)
    tol = 3e-2 if USE_BF16_MXU else 1e-4
    assert jnp.allclose(out, ref, rtol=tol, atol=tol), "mismatch vs JAX reference"

    print("KERNEL_OK")
</pallas_src>

<mosaic_0001>
module attributes {stable_mosaic.version = 11 : i64} {
  func.func @gemm_bias_relu_kernel(%arg0: i32, %arg1: memref<224x256xbf16, #tpu.memory_space<vmem>>, %arg2: memref<256x32xbf16, #tpu.memory_space<vmem>>, %arg3: memref<1x32xf32, #tpu.memory_space<vmem>>, %arg4: memref<224x32xbf16, #tpu.memory_space<vmem>>) attributes {dimension_semantics = [#tpu.dimension_semantics<parallel>], iteration_bounds = array<i64: 4>, scalar_prefetch = 0 : i64, scratch_operands = 0 : i64, tpu.core_type = #tpu.core_type<tc>, window_params = [{transform_indices = @transform_0, window_bounds = array<i64: 224, 256>}, {pipeline_mode = #tpu.pipeline_mode<synchronous>, transform_indices = @transform_1, window_bounds = array<i64: 256, 32>}, {pipeline_mode = #tpu.pipeline_mode<synchronous>, transform_indices = @transform_2, window_bounds = array<i64: 1, 32>}, {transform_indices = @transform_3, window_bounds = array<i64: 224, 32>}]} {
    %c0 = arith.constant 0 : index
    %c0_0 = arith.constant 0 : index
    %0 = vector.load %arg1[%c0, %c0_0] : memref<224x256xbf16, #tpu.memory_space<vmem>>, vector<224x256xbf16>
    %c0_1 = arith.constant 0 : index
    %c0_2 = arith.constant 0 : index
    %1 = vector.load %arg2[%c0_1, %c0_2] : memref<256x32xbf16, #tpu.memory_space<vmem>>, vector<256x32xbf16>
    %cst = arith.constant dense<0.000000e+00> : vector<224x32xf32>
    %2 = tpu.matmul %0, %1, %cst {dimension_numbers = #tpu.dot_dimension_numbers<[1], [0], [0], [1], [0, 0, 1, 1], [], []>} : vector<224x256xbf16>, vector<256x32xbf16>, vector<224x32xf32> -> vector<224x32xf32>
    %c0_3 = arith.constant 0 : index
    %c0_4 = arith.constant 0 : index
    %3 = vector.load %arg3[%c0_3, %c0_4] : memref<1x32xf32, #tpu.memory_space<vmem>>, vector<1x32xf32>
    %4 = vector.broadcast %3 : vector<1x32xf32> to vector<224x32xf32>
    %5 = arith.addf %2, %4 : vector<224x32xf32>
    %cst_5 = arith.constant 0.000000e+00 : f32
    %6 = vector.broadcast %cst_5 : f32 to vector<224x32xf32>
    %7 = arith.maximumf %5, %6 : vector<224x32xf32>
    %8 = arith.truncf %7 : vector<224x32xf32> to vector<224x32xbf16>
    %c0_6 = arith.constant 0 : index
    %c0_7 = arith.constant 0 : index
    %9 = vector.load %arg4[%c0_6, %c0_7] : memref<224x32xbf16, #tpu.memory_space<vmem>>, vector<224x32xbf16>
    tpu.vector_store %arg4[%c0_6, %c0_7], %8 {strides = array<i32>} : memref<224x32xbf16, #tpu.memory_space<vmem>>, vector<224x32xbf16>,
    return
  }
  func.func @transform_0(%arg0: i32) -> (i32, i32) {
    %c0_i32 = arith.constant 0 : i32
    %c0_i32_0 = arith.constant 0 : i32
    return %arg0, %c0_i32 : i32, i32
  }
  func.func @transform_1(%arg0: i32) -> (i32, i32) {
    %c0_i32 = arith.constant 0 : i32
    %c0_i32_0 = arith.constant 0 : i32
    %c0_i32_1 = arith.constant 0 : i32
    return %c0_i32, %c0_i32_0 : i32, i32
  }
  func.func @transform_2(%arg0: i32) -> (i32, i32) {
    %c0_i32 = arith.constant 0 : i32
    %c0_i32_0 = arith.constant 0 : i32
    %c0_i32_1 = arith.constant 0 : i32
    return %c0_i32, %c0_i32_0 : i32, i32
  }
  func.func @transform_3(%arg0: i32) -> (i32, i32) {
    %c0_i32 = arith.constant 0 : i32
    %c0_i32_0 = arith.constant 0 : i32
    return %arg0, %c0_i32 : i32, i32
  }
}

module attributes {stable_mosaic.version = 11 : i64} {
  func.func @gemm_bias_relu_kernel(%arg0: i32, %arg1: memref<64x512xbf16, #tpu.memory_space<vmem>>, %arg2: memref<512x64xbf16, #tpu.memory_space<vmem>>, %arg3: memref<1x64xf32, #tpu.memory_space<vmem>>, %arg4: memref<64x64xbf16, #tpu.memory_space<vmem>>) attributes {dimension_semantics = [#tpu.dimension_semantics<parallel>], iteration_bounds = array<i64: 4>, scalar_prefetch = 0 : i64, scratch_operands = 0 : i64, tpu.core_type = #tpu.core_type<tc>, window_params = [{transform_indices = @transform_0, window_bounds = array<i64: 64, 512>}, {pipeline_mode = #tpu.pipeline_mode<synchronous>, transform_indices = @transform_1, window_bounds = array<i64: 512, 64>}, {pipeline_mode = #tpu.pipeline_mode<synchronous>, transform_indices = @transform_2, window_bounds = array<i64: 1, 64>}, {transform_indices = @transform_3, window_bounds = array<i64: 64, 64>}]} {
    %c0 = arith.constant 0 : index
    %c0_0 = arith.constant 0 : index
    %0 = vector.load %arg1[%c0, %c0_0] : memref<64x512xbf16, #tpu.memory_space<vmem>>, vector<64x512xbf16>
    %c0_1 = arith.constant 0 : index
    %c0_2 = arith.constant 0 : index
    %1 = vector.load %arg2[%c0_1, %c0_2] : memref<512x64xbf16, #tpu.memory_space<vmem>>, vector<512x64xbf16>
    %cst = arith.constant dense<0.000000e+00> : vector<64x64xf32>
    %2 = tpu.matmul %0, %1, %cst {dimension_numbers = #tpu.dot_dimension_numbers<[1], [0], [0], [1], [0, 0, 1, 1], [], []>} : vector<64x512xbf16>, vector<512x64xbf16>, vector<64x64xf32> -> vector<64x64xf32>
    %c0_3 = arith.constant 0 : index
    %c0_4 = arith.constant 0 : index
    %3 = vector.load %arg3[%c0_3, %c0_4] : memref<1x64xf32, #tpu.memory_space<vmem>>, vector<1x64xf32>
    %4 = vector.broadcast %3 : vector<1x64xf32> to vector<64x64xf32>
    %5 = arith.addf %2, %4 : vector<64x64xf32>
    %cst_5 = arith.constant 0.000000e+00 : f32
    %6 = vector.broadcast %cst_5 : f32 to vector<64x64xf32>
    %7 = arith.maximumf %5, %6 : vector<64x64xf32>
    %8 = arith.truncf %7 : vector<64x64xf32> to vector<64x64xbf16>
    %c0_6 = arith.constant 0 : index
    %c0_7 = arith.constant 0 : index
    %9 = vector.load %arg4[%c0_6, %c0_7] : memref<64x64xbf16, #tpu.memory_space<vmem>>, vector<64x64xbf16>
    tpu.vector_store %arg4[%c0_6, %c0_7], %8 {strides = array<i32>} : memref<64x64xbf16, #tpu.memory_space<vmem>>, vector<64x64xbf16>,
    return
  }
  func.func @transform_0(%arg0: i32) -> (i32, i32) {
    %c0_i32 = arith.constant 0 : i32
    %c0_i32_0 = arith.constant 0 : i32
    return %arg0, %c0_i32 : i32, i32
  }
  func.func @transform_1(%arg0: i32) -> (i32, i32) {
    %c0_i32 = arith.constant 0 : i32
    %c0_i32_0 = arith.constant 0 : i32
    %c0_i32_1 = arith.constant 0 : i32
    return %c0_i32, %c0_i32_0 : i32, i32
  }
  func.func @transform_2(%arg0: i32) -> (i32, i32) {
    %c0_i32 = arith.constant 0 : i32
    %c0_i32_0 = arith.constant 0 : i32
    %c0_i32_1 = arith.constant 0 : i32
    return %c0_i32, %c0_i32_0 : i32, i32
  }
  func.func @transform_3(%arg0: i32) -> (i32, i32) {
    %c0_i32 = arith.constant 0 : i32
    %c0_i32_0 = arith.constant 0 : i32
    return %arg0, %c0_i32 : i32, i32
  }
}

module attributes {stable_mosaic.version = 11 : i64} {
  func.func @gemm_bias_relu_kernel(%arg0: i32, %arg1: memref<64x576xbf16, #tpu.memory_space<vmem>>, %arg2: memref<576x64xbf16, #tpu.memory_space<vmem>>, %arg3: memref<1x64xf32, #tpu.memory_space<vmem>>, %arg4: memref<64x64xf32, #tpu.memory_space<vmem>>) attributes {dimension_semantics = [#tpu.dimension_semantics<parallel>], iteration_bounds = array<i64: 4>, scalar_prefetch = 0 : i64, scratch_operands = 0 : i64, tpu.core_type = #tpu.core_type<tc>, window_params = [{transform_indices = @transform_0, window_bounds = array<i64: 64, 576>}, {pipeline_mode = #tpu.pipeline_mode<synchronous>, transform_indices = @transform_1, window_bounds = array<i64: 576, 64>}, {pipeline_mode = #tpu.pipeline_mode<synchronous>, transform_indices = @transform_2, window_bounds = array<i64: 1, 64>}, {transform_indices = @transform_3, window_bounds = array<i64: 64, 64>}]} {
    %c0 = arith.constant 0 : index
    %c0_0 = arith.constant 0 : index
    %0 = vector.load %arg1[%c0, %c0_0] : memref<64x576xbf16, #tpu.memory_space<vmem>>, vector<64x576xbf16>
    %c0_1 = arith.constant 0 : index
    %c0_2 = arith.constant 0 : index
    %1 = vector.load %arg2[%c0_1, %c0_2] : memref<576x64xbf16, #tpu.memory_space<vmem>>, vector<576x64xbf16>
    %cst = arith.constant dense<0.000000e+00> : vector<64x64xf32>
    %2 = tpu.matmul %0, %1, %cst {dimension_numbers = #tpu.dot_dimension_numbers<[1], [0], [0], [1], [0, 0, 1, 1], [], []>} : vector<64x576xbf16>, vector<576x64xbf16>, vector<64x64xf32> -> vector<64x64xf32>
    %c0_3 = arith.constant 0 : index
    %c0_4 = arith.constant 0 : index
    %3 = vector.load %arg3[%c0_3, %c0_4] : memref<1x64xf32, #tpu.memory_space<vmem>>, vector<1x64xf32>
    %4 = vector.broadcast %3 : vector<1x64xf32> to vector<64x64xf32>
    %5 = arith.addf %2, %4 : vector<64x64xf32>
    %cst_5 = arith.constant 0.000000e+00 : f32
    %6 = vector.broadcast %cst_5 : f32 to vector<64x64xf32>
    %7 = arith.maximumf %5, %6 : vector<64x64xf32>
    %c0_6 = arith.constant 0 : index
    %c0_7 = arith.constant 0 : index
    %8 = vector.load %arg4[%c0_6, %c0_7] : memref<64x64xf32, #tpu.memory_space<vmem>>, vector<64x64xf32>
    tpu.vector_store %arg4[%c0_6, %c0_7], %7 {strides = array<i32>} : memref<64x64xf32, #tpu.memory_space<vmem>>, vector<64x64xf32>,
    return
  }
  func.func @transform_0(%arg0: i32) -> (i32, i32) {
    %c0_i32 = arith.constant 0 : i32
    %c0_i32_0 = arith.constant 0 : i32
    return %arg0, %c0_i32 : i32, i32
  }
  func.func @transform_1(%arg0: i32) -> (i32, i32) {
    %c0_i32 = arith.constant 0 : i32
    %c0_i32_0 = arith.constant 0 : i32
    %c0_i32_1 = arith.constant 0 : i32
    return %c0_i32, %c0_i32_0 : i32, i32
  }
  func.func @transform_2(%arg0: i32) -> (i32, i32) {
    %c0_i32 = arith.constant 0 : i32
    %c0_i32_0 = arith.constant 0 : i32
    %c0_i32_1 = arith.constant 0 : i32
    return %c0_i32, %c0_i32_0 : i32, i32
  }
  func.func @transform_3(%arg0: i32) -> (i32, i32) {
    %c0_i32 = arith.constant 0 : i32
    %c0_i32_0 = arith.constant 0 : i32
    return %arg0, %c0_i32 : i32, i32
  }
}

</mosaic_0001>

<llo_original>
// kernel: encoder_forward.3
$region0: #{encoder_forward.3}
  #allocation0 [shape = 'u32[]', space=smem, size = 0x4, offset = 0x4, fixed_abs, tag = 'smem constant byte address 0x4 - core index']
  #allocation1 [shape = 'u32[72,128]{1,0:T(1,128)}', space=vmem, size = 0x9000, scoped, tag = 'internal scratch']
  %s0 = inlined_call_operand.vmem [shape: bf16[882,256], index: 0, kind: input, shape index: {}]
  %s1 = inlined_call_operand.vmem [shape: bf16[256,32], index: 1, kind: input, shape index: {}]
  %s2 = inlined_call_operand.vmem [shape: f32[1,32], index: 2, kind: input, shape index: {}]
  %s3 = inlined_call_operand.vmem [shape: bf16[882,32], index: 3, kind: output, shape index: {}]
  %s4 = sld [smem:[#allocation0]]
  $region89: #{encoder_forward.3} parent=0
    _
  %s6 = ssub.s32 1, %s4
  %s7 = scalar_select 0, %s6, %s4
  $region1: #{encoder_forward.3} parent=0
    #allocation2 [shape = 'u8[114688]{0}', space=vmem, size = 0x1c000, scoped, tag = 'output window, operand 0']
    loop: start=0, step=1, limit=6
    $region2: #{encoder_forward.3} parent=1 // loop_pre_header
      _
    $region3: #{encoder_forward.3} parent=1 // loop_header
      %s9 = sphi 0, %s13
      %p10 = scmp.ge.s32.totalorder %s9, 6
      %s19 = sphi 0, %s21
      %s22 = sphi 0, %s19
      %s23 = sphi 0, %s22
      %s39 = sphi 0, %s23
      %s43 = sphi 0, %s43
      %s45 = sphi 0, %s43
      %s46 = sphi 0, %s45
      %s60 = sphi 0, %s46
      %s64 = sphi 0, %s64
      %s66 = sphi 0, %s64
      %s67 = sphi 0, %s66
      %s81 = sphi 0, %s67
      %s87 = sphi 0, %s89
      %s90 = sphi 0, %s87
      %s91 = sphi 0, %s90
      %s107 = sphi 0, %s91
    $region4: #{encoder_forward.3} parent=1 // loop_header_branch
      %12 = sbr.rel (%p10) target = $region8
    $region5: #{encoder_forward.3} parent=1 // loop_body
      %s14 = ssub.s32 %s9, 1
      %s15 = ssub.s32 %s9, 2
      %s16 = sadd.s32 %s9, 1
      %s17 = ssub.s32 %s9, %s16
      %p18 = scmp.eq.s32.totalorder %s17, 0
      %s20 = sadd.s32 %s19, 1
      %s21 = scalar_select %p18, %s19, %s20
      %p24 = pneg %p18
      %p25 = scmp.eq.s32.totalorder %s9, 3
      %p26 = por %p24, %p25
      %p27 = scmp.ne.s32.totalorder %s19, %s22
      %p28 = scmp.eq.s32.totalorder %s9, 0
      %p29 = por %p27, %p28
      %p30 = scmp.ne.s32.totalorder %s19, %s22
      %p31 = scmp.eq.s32.totalorder %s14, 3
      %p32 = por %p30, %p31
      %p33 = scmp.ne.s32.totalorder %s22, %s23
      %p34 = scmp.eq.s32.totalorder %s14, 0
      %p35 = por %p33, %p34
      %p36 = scmp.ne.s32.totalorder %s22, %s23
      %p37 = scmp.eq.s32.totalorder %s15, 3
      %p38 = por %p36, %p37
      %p40 = scmp.ne.s32.totalorder %s23, %s39
      %p41 = scmp.eq.s32.totalorder %s15, 0
      %p42 = por %p40, %p41
      %s44 = sadd.s32 %s43, 1
      %p47 = scmp.eq.s32.totalorder %s9, 3
      %p48 = scmp.ne.s32.totalorder %s43, %s45
      %p49 = scmp.eq.s32.totalorder %s9, 0
      %p50 = por %p48, %p49
      %p51 = scmp.ne.s32.totalorder %s43, %s45
      %p52 = scmp.eq.s32.totalorder %s14, 3
      %p53 = por %p51, %p52
      %p54 = scmp.ne.s32.totalorder %s45, %s46
      %p55 = scmp.eq.s32.totalorder %s14, 0
      %p56 = por %p54, %p55
      %p57 = scmp.ne.s32.totalorder %s45, %s46
      %p58 = scmp.eq.s32.totalorder %s15, 3
      %p59 = por %p57, %p58
      %p61 = scmp.ne.s32.totalorder %s46, %s60
      %p62 = scmp.eq.s32.totalorder %s15, 0
      %p63 = por %p61, %p62
      %s65 = sadd.s32 %s64, 1
      %p68 = scmp.eq.s32.totalorder %s9, 3
      %p69 = scmp.ne.s32.totalorder %s64, %s66
      %p70 = scmp.eq.s32.totalorder %s9, 0
      %p71 = por %p69, %p70
      %p72 = scmp.ne.s32.totalorder %s64, %s66
      %p73 = scmp.eq.s32.totalorder %s14, 3
      %p74 = por %p72, %p73
      %p75 = scmp.ne.s32.totalorder %s66, %s67
      %p76 = scmp.eq.s32.totalorder %s14, 0
      %p77 = por %p75, %p76
      %p78 = scmp.ne.s32.totalorder %s66, %s67
      %p79 = scmp.eq.s32.totalorder %s15, 3
      %p80 = por %p78, %p79
      %p82 = scmp.ne.s32.totalorder %s67, %s81
      %p83 = scmp.eq.s32.totalorder %s15, 0
      %p84 = por %p82, %p83
      %s85 = ssub.s32 %s9, %s16
      %p86 = scmp.eq.s32.totalorder %s85, 0
      %s88 = sadd.s32 %s87, 1
      %s89 = scalar_select %p86, %s87, %s88
      %p92 = pneg %p86
      %p93 = scmp.eq.s32.totalorder %s9, 3
      %p94 = por %p92, %p93
      %p95 = scmp.ne.s32.totalorder %s87, %s90
      %p96 = scmp.eq.s32.totalorder %s9, 0
      %p97 = por %p95, %p96
      %p98 = scmp.ne.s32.totalorder %s87, %s90
      %p99 = scmp.eq.s32.totalorder %s14, 3
      %p100 = por %p98, %p99
      %p101 = scmp.ne.s32.totalorder %s90, %s91
      %p102 = scmp.eq.s32.totalorder %s14, 0
      %p103 = por %p101, %p102
      %p104 = scmp.ne.s32.totalorder %s90, %s91
      %p105 = scmp.eq.s32.totalorder %s15, 3
      %p106 = por %p104, %p105
      %p108 = scmp.ne.s32.totalorder %s91, %s107
      %p109 = scmp.eq.s32.totalorder %s15, 0
      %p110 = por %p108, %p109
      %p111 = scmp.le.s32.totalorder 1, %s9
      %p112 = scmp.lt.s32.totalorder %s9, 5
      %p113 = pnand %p111, %p112
      %p114 = pneg %p113
      // Predicated region
      $region9: #{encoder_forward.3} parent=5 // pred_check
        _
      $region10: #{encoder_forward.3} parent=5 // pred_check_branch
        %116 = sbr.rel (%p113) target = $region12
      $region11: #{encoder_forward.3} parent=5 // pred_region
        %s117 = ssub.s32 %s9, 1
        // Predicated region
        $region13: #{encoder_forward.3} parent=11 // pred_check
          %p118 = pneg %p56
        $region14: #{encoder_forward.3} parent=11 // pred_check_branch
          %120 = sbr.rel (%p118) target = $region16
        $region15: #{encoder_forward.3} parent=11 // pred_region
          _
        $region16: #{encoder_forward.3} parent=11 // pred_fallthru
          _
        // Predicated region
        $region17: #{encoder_forward.3} parent=11 // pred_check
          %p121 = pneg %p77
        $region18: #{encoder_forward.3} parent=11 // pred_check_branch
          %123 = sbr.rel (%p121) target = $region20
        $region19: #{encoder_forward.3} parent=11 // pred_region
          _
        $region20: #{encoder_forward.3} parent=11 // pred_fallthru
          _
      $region12: #{encoder_forward.3} parent=5 // pred_fallthru
        _
      %p124 = scmp.lt.s32.totalorder %s9, 4
      // Predicated region
      $region21: #{encoder_forward.3} parent=5 // pred_check
        %p125 = pneg %p124
      $region22: #{encoder_forward.3} parent=5 // pred_check_branch
        %127 = sbr.rel (%p125) target = $region24
      $region23: #{encoder_forward.3} parent=5 // pred_region
        // Predicated region
        $region25: #{encoder_forward.3} parent=23 // pred_check
          %p128 = pneg %p29
        $region26: #{encoder_forward.3} parent=23 // pred_check_branch
          %130 = sbr.rel (%p128) target = $region28
        $region27: #{encoder_forward.3} parent=23 // pred_region
          %s131 = smul.u32 28, %s9
          %s132 = ssub.s32 111, %s131
          %p133 = scmp.lt.s32.totalorder %s132, 28
          %s134 = scalar_select %p133, %s132, 28
          %s135 = smul.u32 4, %s134
          %s136 = smul.u32 %s135, 2
          %p137 = scmp.lt.s32.totalorder %s131, 110
          %s138 = scalar_select %p137, %s131, 110
          %s139 = smul.addr %s138, 2
          %s140 = smul.addr %s139, 4
          %s141 = scalar_lea.vmem %s0, %s140
          %s142 = smul.u32 28, %s9
          %s143 = ssub.s32 111, %s142
          %p144 = scmp.lt.s32.totalorder %s143, 28
          %s145 = scalar_select %p144, %s143, 28
          %s146 = smul.u32 4, %s145
          %s147 = smul.u32 %s146, 2
        $region28: #{encoder_forward.3} parent=23 // pred_fallthru
          _
      $region24: #{encoder_forward.3} parent=5 // pred_fallthru
        _
      %p148 = scmp.le.s32.totalorder 1, %s9
      %p149 = scmp.lt.s32.totalorder %s9, 5
      %p150 = pnand %p148, %p149
      %p151 = pneg %p150
      // Predicated region
      $region29: #{encoder_forward.3} parent=5 // pred_check
        _
      $region30: #{encoder_forward.3} parent=5 // pred_check_branch
        %153 = sbr.rel (%p150) target = $region32
      $region31: #{encoder_forward.3} parent=5 // pred_region
        %s154 = ssub.s32 %s9, 1
        %s155 = smul.u32 28, %s14
        %s156 = ssub.s32 111, %s155
        %p157 = scmp.lt.s32.totalorder %s156, 28
        %s158 = scalar_select %p157, %s156, 28
        %s159 = smul.u32 4, %s158
        %s160 = smul.u32 %s159, 2
        %p161 = scmp.lt.s32.totalorder %s155, 110
        %s162 = scalar_select %p161, %s155, 110
        %s163 = smul.addr %s162, 2
        %s164 = smul.addr %s163, 4
        %s165 = scalar_lea.vmem %s0, %s164
        %p166 = pneg %p35
        %p167 = pneg %p32
        %p168 = pneg %p56
        %p169 = pneg %p53
        %p170 = pneg %p77
        %p171 = pneg %p74
        %p172 = pneg %p103
        %p173 = pneg %p100
        %s174 = sand.u32 %s90, 1
        %s175 = sand.u32 %s90, 1
        %s176 = smul.addr %s175, 112
        %s177 = scalar_lea.vmem [#allocation2], %s176
        %s178 = smul.u32 28, %s14
        %s179 = ssub.s32 111, %s178
        %p180 = scmp.lt.s32.totalorder %s179, 28
        %s181 = scalar_select %p180, %s179, 28
        %s182 = smul.u32 4, %s181
        %s183 = smul.u32 %s182, 2
        %p184 = scmp.lt.s32.totalorder %s178, 110
        %s185 = scalar_select %p184, %s178, 110
        %s186 = smul.addr %s185, 2
        %s187 = smul.addr %s186, 4
        %s188 = scalar_lea.vmem %s0, %s187
        %s189 = smul.u32 28, %s14
        %s190 = ssub.s32 111, %s189
        %p191 = scmp.lt.s32.totalorder %s190, 28
        %s192 = scalar_select %p191, %s190, 28
        %s193 = smul.u32 4, %s192
        %s194 = smul.u32 %s193, 2
        %s195 = smul.u32 28, %s14
        %s196 = ssub.s32 111, %s195
        %p197 = scmp.lt.s32.totalorder %s196, 28
        %s198 = scalar_select %p197, %s196, 28
        %s199 = smul.u32 4, %s198
        %v200 = vld [vmem:[%s188] sm:$0xff]
        %v201 = vld [vmem:[%s188 + $0x8] sm:$0xff]
        %v202 = vld [vmem:[%s188 + $0x10] sm:$0xff]
        %v203 = vld [vmem:[%s188 + $0x18] sm:$0xff]
        %v204 = vld [vmem:[%s188 + $0x20] sm:$0xff]
        %v205 = vld [vmem:[%s188 + $0x28] sm:$0xff]
        %v206 = vld [vmem:[%s188 + $0x30] sm:$0xff]
        %v207 = vld [vmem:[%s188 + $0x38] sm:$0xff]
        %v208 = vld [vmem:[%s188 + $0x40] sm:$0xff]
        %v209 = vld [vmem:[%s188 + $0x48] sm:$0xff]
        %v210 = vld [vmem:[%s188 + $0x50] sm:$0xff]
        %v211 = vld [vmem:[%s188 + $0x58] sm:$0xff]
        %v212 = vld [vmem:[%s188 + $0x60] sm:$0xff]
        %v213 = vld [vmem:[%s188 + $0x68] sm:$0xff]
        %v214 = vld [vmem:[%s188 + $0x70] sm:$0xff]
        %v215 = vld [vmem:[%s188 + $0x78] sm:$0xff]
        %v216 = vld [vmem:[%s188 + $0x80] sm:$0xff]
        %v217 = vld [vmem:[%s188 + $0x88] sm:$0xff]
        %v218 = vld [vmem:[%s188 + $0x90] sm:$0xff]
        %v219 = vld [vmem:[%s188 + $0x98] sm:$0xff]
        %v220 = vld [vmem:[%s188 + $0xa0] sm:$0xff]
        %v221 = vld [vmem:[%s188 + $0xa8] sm:$0xff]
        %v222 = vld [vmem:[%s188 + $0xb0] sm:$0xff]
        %v223 = vld [vmem:[%s188 + $0xb8] sm:$0xff]
        %v224 = vld [vmem:[%s188 + $0xc0] sm:$0xff]
        %v225 = vld [vmem:[%s188 + $0xc8] sm:$0xff]
        %v226 = vld [vmem:[%s188 + $0xd0] sm:$0xff]
        %v227 = vld [vmem:[%s188 + $0xd8] sm:$0xff]
        %v228 = vld [vmem:[%s1] sm:$0xf]
        %v229 = vld [vmem:[%s1 + $0x4] sm:$0xf]
        %v230 = vld [vmem:[%s1 + $0x8] sm:$0xf]
        %v231 = vld [vmem:[%s1 + $0xc] sm:$0xf]
        %v232 = vld [vmem:[%s1 + $0x10] sm:$0xf]
        %v233 = vld [vmem:[%s1 + $0x14] sm:$0xf]
        %v234 = vld [vmem:[%s1 + $0x18] sm:$0xf]
        %v235 = vld [vmem:[%s1 + $0x1c] sm:$0xf]
        %v236 = vld [vmem:[%s1 + $0x20] sm:$0xf]
        %v237 = vld [vmem:[%s1 + $0x24] sm:$0xf]
        %v238 = vld [vmem:[%s1 + $0x28] sm:$0xf]
        %v239 = vld [vmem:[%s1 + $0x2c] sm:$0xf]
        %v240 = vld [vmem:[%s1 + $0x30] sm:$0xf]
        %v241 = vld [vmem:[%s1 + $0x34] sm:$0xf]
        %v242 = vld [vmem:[%s1 + $0x38] sm:$0xf]
        %v243 = vld [vmem:[%s1 + $0x3c] sm:$0xf]
        %v244 = vld [vmem:[%s1 + $0x40] sm:$0xf]
        %v245 = vld [vmem:[%s1 + $0x44] sm:$0xf]
        %v246 = vld [vmem:[%s1 + $0x48] sm:$0xf]
        %v247 = vld [vmem:[%s1 + $0x4c] sm:$0xf]
        %v248 = vld [vmem:[%s1 + $0x50] sm:$0xf]
        %v249 = vld [vmem:[%s1 + $0x54] sm:$0xf]
        %v250 = vld [vmem:[%s1 + $0x58] sm:$0xf]
        %v251 = vld [vmem:[%s1 + $0x5c] sm:$0xf]
        %v252 = vld [vmem:[%s1 + $0x60] sm:$0xf]
        %v253 = vld [vmem:[%s1 + $0x64] sm:$0xf]
        %v254 = vld [vmem:[%s1 + $0x68] sm:$0xf]
        %v255 = vld [vmem:[%s1 + $0x6c] sm:$0xf]
        %v256 = vld [vmem:[%s1 + $0x70] sm:$0xf]
        %v257 = vld [vmem:[%s1 + $0x74] sm:$0xf]
        %v258 = vld [vmem:[%s1 + $0x78] sm:$0xf]
        %v259 = vld [vmem:[%s1 + $0x7c] sm:$0xf]
        %v260 = vld [vmem:[%s2] sm:$0x1]
        %v262 = vperm.slane %v260, 0
        %v292 = vunpack.c.l.b16 %v200
        %v293 = vunpack.c.h.b16 %v200
        %v294 = vunpack.c.l.b16 %v201
        %v295 = vunpack.c.h.b16 %v201
        %v296 = vunpack.c.l.b16 %v202
        %v297 = vunpack.c.h.b16 %v202
        %v298 = vunpack.c.l.b16 %v203
        %v299 = vunpack.c.h.b16 %v203
        %v300 = vunpack.c.l.b16 %v204
        %v301 = vunpack.c.h.b16 %v204
        %v302 = vunpack.c.l.b16 %v205
        %v303 = vunpack.c.h.b16 %v205
        %v304 = vunpack.c.l.b16 %v206
        %v305 = vunpack.c.h.b16 %v206
        %v306 = vunpack.c.l.b16 %v207
        %v307 = vunpack.c.h.b16 %v207
        %v308 = vunpack.c.l.b16 %v208
        %v309 = vunpack.c.h.b16 %v208
        %v310 = vunpack.c.l.b16 %v209
        %v311 = vunpack.c.h.b16 %v209
        %v312 = vunpack.c.l.b16 %v210
        %v313 = vunpack.c.h.b16 %v210
        %v314 = vunpack.c.l.b16 %v211
        %v315 = vunpack.c.h.b16 %v211
        %v316 = vunpack.c.l.b16 %v212
        %v317 = vunpack.c.h.b16 %v212
        %v318 = vunpack.c.l.b16 %v213
        %v319 = vunpack.c.h.b16 %v213
        %v320 = vunpack.c.l.b16 %v214
        %v321 = vunpack.c.h.b16 %v214
        %v322 = vunpack.c.l.b16 %v215
        %v323 = vunpack.c.h.b16 %v215
        %v324 = vunpack.c.l.b16 %v216
        %v325 = vunpack.c.h.b16 %v216
        %v326 = vunpack.c.l.b16 %v217
        %v327 = vunpack.c.h.b16 %v217
        %v328 = vunpack.c.l.b16 %v218
        %v329 = vunpack.c.h.b16 %v218
        %v330 = vunpack.c.l.b16 %v219
        %v331 = vunpack.c.h.b16 %v219
        %v332 = vunpack.c.l.b16 %v220
        %v333 = vunpack.c.h.b16 %v220
        %v334 = vunpack.c.l.b16 %v221
        %v335 = vunpack.c.h.b16 %v221
        %v336 = vunpack.c.l.b16 %v222
        %v337 = vunpack.c.h.b16 %v222
        %v338 = vunpack.c.l.b16 %v223
        %v339 = vunpack.c.h.b16 %v223
        %v340 = vunpack.c.l.b16 %v224
        %v341 = vunpack.c.h.b16 %v224
        %v342 = vunpack.c.l.b16 %v225
        %v343 = vunpack.c.h.b16 %v225
        %v344 = vunpack.c.l.b16 %v226
        %v345 = vunpack.c.h.b16 %v226
        %v346 = vunpack.c.l.b16 %v227
        %v347 = vunpack.c.h.b16 %v227
        %v348 = vpack.c.b16 %v294, %v292
        %v349 = vpack.c.b16 %v295, %v293
        %v350 = vpack.c.b16 %v298, %v296
        %v351 = vpack.c.b16 %v299, %v297
        %v352 = vpack.c.b16 %v302, %v300
        %v353 = vpack.c.b16 %v303, %v301
        %v354 = vpack.c.b16 %v306, %v304
        %v355 = vpack.c.b16 %v307, %v305
        %v356 = vpack.c.b16 %v310, %v308
        %v357 = vpack.c.b16 %v311, %v309
        %v358 = vpack.c.b16 %v314, %v312
        %v359 = vpack.c.b16 %v315, %v313
        %v360 = vpack.c.b16 %v318, %v316
        %v361 = vpack.c.b16 %v319, %v317
        %v362 = vpack.c.b16 %v322, %v320
        %v363 = vpack.c.b16 %v323, %v321
        %v364 = vpack.c.b16 %v326, %v324
        %v365 = vpack.c.b16 %v327, %v325
        %v366 = vpack.c.b16 %v330, %v328
        %v367 = vpack.c.b16 %v331, %v329
        %v368 = vpack.c.b16 %v334, %v332
        %v369 = vpack.c.b16 %v335, %v333
        %v370 = vpack.c.b16 %v338, %v336
        %v371 = vpack.c.b16 %v339, %v337
        %v372 = vpack.c.b16 %v342, %v340
        %v373 = vpack.c.b16 %v343, %v341
        %v374 = vpack.c.b16 %v346, %v344
        %v375 = vpack.c.b16 %v347, %v345
        %v436 = vunpack.c.l.b16 %v228
        %v437 = vunpack.c.l.b16 %v229
        %v438 = vunpack.c.l.b16 %v230
        %v439 = vunpack.c.l.b16 %v231
        %v440 = vunpack.c.l.b16 %v232
        %v441 = vunpack.c.l.b16 %v233
        %v442 = vunpack.c.l.b16 %v234
        %v443 = vunpack.c.l.b16 %v235
        %v444 = vunpack.c.l.b16 %v236
        %v445 = vunpack.c.l.b16 %v237
        %v446 = vunpack.c.l.b16 %v238
        %v447 = vunpack.c.l.b16 %v239
        %v448 = vunpack.c.l.b16 %v240
        %v449 = vunpack.c.l.b16 %v241
        %v450 = vunpack.c.l.b16 %v242
        %v451 = vunpack.c.l.b16 %v243
        %v452 = vunpack.c.l.b16 %v244
        %v453 = vunpack.c.l.b16 %v245
        %v454 = vunpack.c.l.b16 %v246
        %v455 = vunpack.c.l.b16 %v247
        %v456 = vunpack.c.l.b16 %v248
        %v457 = vunpack.c.l.b16 %v249
        %v458 = vunpack.c.l.b16 %v250
        %v459 = vunpack.c.l.b16 %v251
        %v460 = vunpack.c.l.b16 %v252
        %v461 = vunpack.c.l.b16 %v253
        %v462 = vunpack.c.l.b16 %v254
        %v463 = vunpack.c.l.b16 %v255
        %v464 = vunpack.c.l.b16 %v256
        %v465 = vunpack.c.l.b16 %v257
        %v466 = vunpack.c.l.b16 %v258
        %v467 = vunpack.c.l.b16 %v259
        %v468 = vpack.c.b16 %v437, %v436
        %v469 = vpack.c.b16 %v439, %v438
        %v470 = vpack.c.b16 %v441, %v440
        %v471 = vpack.c.b16 %v443, %v442
        %v472 = vpack.c.b16 %v445, %v444
        %v473 = vpack.c.b16 %v447, %v446
        %v474 = vpack.c.b16 %v449, %v448
        %v475 = vpack.c.b16 %v451, %v450
        %v476 = vpack.c.b16 %v453, %v452
        %v477 = vpack.c.b16 %v455, %v454
        %v478 = vpack.c.b16 %v457, %v456
        %v479 = vpack.c.b16 %v459, %v458
        %v480 = vpack.c.b16 %v461, %v460
        %v481 = vpack.c.b16 %v463, %v462
        %v482 = vpack.c.b16 %v465, %v464
        %v483 = vpack.c.b16 %v467, %v466
        %500 = vmatpush.bf16.msra.mxu0 %v475
        %501 = vmatpush.bf16.msra.mxu0 %v474
        %502 = vmatpush.bf16.msra.mxu0 %v473
        %503 = vmatpush.bf16.msra.mxu0 %v472
        %504 = vmatpush.bf16.msra.mxu0 %v471
        %505 = vmatpush.bf16.msra.mxu0 %v470
        %506 = vmatpush.bf16.msra.mxu0 %v469
        %507 = vmatpush.bf16.msra.mxu0 %v468
        %508 = vmatmul.bf16.gmra.mxu0 %v348
        %v509 = vpop.f32.mrf.mxu0
        %v510 = vadd.f32 %v262, %v509
        %v511 = vpop.f32.mrf.mxu0
        %v512 = vadd.f32 %v262, %v511
        %513 = vmatmul.bf16.gmra.mxu0 %v350
        %v514 = vpop.f32.mrf.mxu0
        %v515 = vadd.f32 %v262, %v514
        %v516 = vpop.f32.mrf.mxu0
        %v517 = vadd.f32 %v262, %v516
        %518 = vmatmul.bf16.gmra.mxu0 %v352
        %v519 = vpop.f32.mrf.mxu0
        %v520 = vadd.f32 %v262, %v519
        %v521 = vpop.f32.mrf.mxu0
        %v522 = vadd.f32 %v262, %v521
        %523 = vmatmul.bf16.gmra.mxu0 %v354
        %v524 = vpop.f32.mrf.mxu0
        %v525 = vadd.f32 %v262, %v524
        %v526 = vpop.f32.mrf.mxu0
        %v527 = vadd.f32 %v262, %v526
        %528 = vmatmul.bf16.gmra.mxu0 %v356
        %v529 = vpop.f32.mrf.mxu0
        %v530 = vadd.f32 %v262, %v529
        %v531 = vpop.f32.mrf.mxu0
        %v532 = vadd.f32 %v262, %v531
        %533 = vmatmul.bf16.gmra.mxu0 %v358
        %v534 = vpop.f32.mrf.mxu0
        %v535 = vadd.f32 %v262, %v534
        %v536 = vpop.f32.mrf.mxu0
        %v537 = vadd.f32 %v262, %v536
        %538 = vmatmul.bf16.gmra.mxu0 %v360
        %v539 = vpop.f32.mrf.mxu0
        %v540 = vadd.f32 %v262, %v539
        %v541 = vpop.f32.mrf.mxu0
        %v542 = vadd.f32 %v262, %v541
        %543 = vmatmul.bf16.gmra.mxu0 %v362
        %v544 = vpop.f32.mrf.mxu0
        %v545 = vadd.f32 %v262, %v544
        %v546 = vpop.f32.mrf.mxu0
        %v547 = vadd.f32 %v262, %v546
        %548 = vmatmul.bf16.gmra.mxu0 %v364
        %v549 = vpop.f32.mrf.mxu0
        %v550 = vadd.f32 %v262, %v549
        %v551 = vpop.f32.mrf.mxu0
        %v552 = vadd.f32 %v262, %v551
        %553 = vmatmul.bf16.gmra.mxu0 %v366
        %v554 = vpop.f32.mrf.mxu0
        %v555 = vadd.f32 %v262, %v554
        %v556 = vpop.f32.mrf.mxu0
        %v557 = vadd.f32 %v262, %v556
        %558 = vmatmul.bf16.gmra.mxu0 %v368
        %v559 = vpop.f32.mrf.mxu0
        %v560 = vadd.f32 %v262, %v559
        %v561 = vpop.f32.mrf.mxu0
        %v562 = vadd.f32 %v262, %v561
        %563 = vmatmul.bf16.gmra.mxu0 %v370
        %v564 = vpop.f32.mrf.mxu0
        %v565 = vadd.f32 %v262, %v564
        %v566 = vpop.f32.mrf.mxu0
        %v567 = vadd.f32 %v262, %v566
        %568 = vmatmul.bf16.gmra.mxu0 %v372
        %v569 = vpop.f32.mrf.mxu0
        %v570 = vadd.f32 %v262, %v569
        %v571 = vpop.f32.mrf.mxu0
        %v572 = vadd.f32 %v262, %v571
        %573 = vmatmul.bf16.gmra.mxu0 %v374
        %v574 = vpop.f32.mrf.mxu0
        %v575 = vadd.f32 %v262, %v574
        %v576 = vpop.f32.mrf.mxu0
        %v577 = vadd.f32 %v262, %v576
        %578 = vdwg.mxu0
        %579 = vmatpush.bf16.msra.mxu0 %v483
        %580 = vmatpush.bf16.msra.mxu0 %v482
        %581 = vmatpush.bf16.msra.mxu0 %v481
        %582 = vmatpush.bf16.msra.mxu0 %v480
        %583 = vmatpush.bf16.msra.mxu0 %v479
        %584 = vmatpush.bf16.msra.mxu0 %v478
        %585 = vmatpush.bf16.msra.mxu0 %v477
        %586 = vmatpush.bf16.msra.mxu0 %v476
        %587 = vmatmul.bf16.gmra.mxu0 %v349
        %v588 = vpop.f32.mrf.mxu0
        %v589 = vadd.f32 %v510, %v588
        %v590 = vpop.f32.mrf.mxu0
        %v591 = vadd.f32 %v512, %v590
        %592 = vmatmul.bf16.gmra.mxu0 %v351
        %v593 = vpop.f32.mrf.mxu0
        %v594 = vadd.f32 %v515, %v593
        %v595 = vpop.f32.mrf.mxu0
        %v596 = vadd.f32 %v517, %v595
        %597 = vmatmul.bf16.gmra.mxu0 %v353
        %v598 = vpop.f32.mrf.mxu0
        %v599 = vadd.f32 %v520, %v598
        %v600 = vpop.f32.mrf.mxu0
        %v601 = vadd.f32 %v522, %v600
        %602 = vmatmul.bf16.gmra.mxu0 %v355
        %v603 = vpop.f32.mrf.mxu0
        %v604 = vadd.f32 %v525, %v603
        %v605 = vpop.f32.mrf.mxu0
        %v606 = vadd.f32 %v527, %v605
        %607 = vmatmul.bf16.gmra.mxu0 %v357
        %v608 = vpop.f32.mrf.mxu0
        %v609 = vadd.f32 %v530, %v608
        %v610 = vpop.f32.mrf.mxu0
        %v611 = vadd.f32 %v532, %v610
        %612 = vmatmul.bf16.gmra.mxu0 %v359
        %v613 = vpop.f32.mrf.mxu0
        %v614 = vadd.f32 %v535, %v613
        %v615 = vpop.f32.mrf.mxu0
        %v616 = vadd.f32 %v537, %v615
        %617 = vmatmul.bf16.gmra.mxu0 %v361
        %v618 = vpop.f32.mrf.mxu0
        %v619 = vadd.f32 %v540, %v618
        %v620 = vpop.f32.mrf.mxu0
        %v621 = vadd.f32 %v542, %v620
        %622 = vmatmul.bf16.gmra.mxu0 %v363
        %v623 = vpop.f32.mrf.mxu0
        %v624 = vadd.f32 %v545, %v623
        %v625 = vpop.f32.mrf.mxu0
        %v626 = vadd.f32 %v547, %v625
        %627 = vmatmul.bf16.gmra.mxu0 %v365
        %v628 = vpop.f32.mrf.mxu0
        %v629 = vadd.f32 %v550, %v628
        %v630 = vpop.f32.mrf.mxu0
        %v631 = vadd.f32 %v552, %v630
        %632 = vmatmul.bf16.gmra.mxu0 %v367
        %v633 = vpop.f32.mrf.mxu0
        %v634 = vadd.f32 %v555, %v633
        %v635 = vpop.f32.mrf.mxu0
        %v636 = vadd.f32 %v557, %v635
        %637 = vmatmul.bf16.gmra.mxu0 %v369
        %v638 = vpop.f32.mrf.mxu0
        %v639 = vadd.f32 %v560, %v638
        %v640 = vpop.f32.mrf.mxu0
        %v641 = vadd.f32 %v562, %v640
        %642 = vmatmul.bf16.gmra.mxu0 %v371
        %v643 = vpop.f32.mrf.mxu0
        %v644 = vadd.f32 %v565, %v643
        %v645 = vpop.f32.mrf.mxu0
        %v646 = vadd.f32 %v567, %v645
        %647 = vmatmul.bf16.gmra.mxu0 %v373
        %v648 = vpop.f32.mrf.mxu0
        %v649 = vadd.f32 %v570, %v648
        %v650 = vpop.f32.mrf.mxu0
        %v651 = vadd.f32 %v572, %v650
        %652 = vmatmul.bf16.gmra.mxu0 %v375
        %v653 = vpop.f32.mrf.mxu0
        %v654 = vadd.f32 %v575, %v653
        %v655 = vpop.f32.mrf.mxu0
        %v656 = vadd.f32 %v577, %v655
        %657 = vdwg.mxu0
        %v658 = vmax.f32 %v589, 0.0
        %v659 = vmax.f32 %v591, 0.0
        %v660 = vmax.f32 %v594, 0.0
        %v661 = vmax.f32 %v596, 0.0
        %v662 = vmax.f32 %v599, 0.0
        %v663 = vmax.f32 %v601, 0.0
        %v664 = vmax.f32 %v604, 0.0
        %v665 = vmax.f32 %v606, 0.0
        %v666 = vmax.f32 %v609, 0.0
        %v667 = vmax.f32 %v611, 0.0
        %v668 = vmax.f32 %v614, 0.0
        %v669 = vmax.f32 %v616, 0.0
        %v670 = vmax.f32 %v619, 0.0
        %v671 = vmax.f32 %v621, 0.0
        %v672 = vmax.f32 %v624, 0.0
        %v673 = vmax.f32 %v626, 0.0
        %v674 = vmax.f32 %v629, 0.0
        %v675 = vmax.f32 %v631, 0.0
        %v676 = vmax.f32 %v634, 0.0
        %v677 = vmax.f32 %v636, 0.0
        %v678 = vmax.f32 %v639, 0.0
        %v679 = vmax.f32 %v641, 0.0
        %v680 = vmax.f32 %v644, 0.0
        %v681 = vmax.f32 %v646, 0.0
        %v682 = vmax.f32 %v649, 0.0
        %v683 = vmax.f32 %v651, 0.0
        %v684 = vmax.f32 %v654, 0.0
        %v685 = vmax.f32 %v656, 0.0
        %v686 = vpack.c.bf16 %v658, %v658
        %v687 = vpack.c.bf16 %v659, %v659
        %v688 = vpack.c.bf16 %v660, %v660
        %v689 = vpack.c.bf16 %v661, %v661
        %v690 = vpack.c.bf16 %v662, %v662
        %v691 = vpack.c.bf16 %v663, %v663
        %v692 = vpack.c.bf16 %v664, %v664
        %v693 = vpack.c.bf16 %v665, %v665
        %v694 = vpack.c.bf16 %v666, %v666
        %v695 = vpack.c.bf16 %v667, %v667
        %v696 = vpack.c.bf16 %v668, %v668
        %v697 = vpack.c.bf16 %v669, %v669
        %v698 = vpack.c.bf16 %v670, %v670
        %v699 = vpack.c.bf16 %v671, %v671
        %v700 = vpack.c.bf16 %v672, %v672
        %v701 = vpack.c.bf16 %v673, %v673
        %v702 = vpack.c.bf16 %v674, %v674
        %v703 = vpack.c.bf16 %v675, %v675
        %v704 = vpack.c.bf16 %v676, %v676
        %v705 = vpack.c.bf16 %v677, %v677
        %v706 = vpack.c.bf16 %v678, %v678
        %v707 = vpack.c.bf16 %v679, %v679
        %v708 = vpack.c.bf16 %v680, %v680
        %v709 = vpack.c.bf16 %v681, %v681
        %v710 = vpack.c.bf16 %v682, %v682
        %v711 = vpack.c.bf16 %v683, %v683
        %v712 = vpack.c.bf16 %v684, %v684
        %v713 = vpack.c.bf16 %v685, %v685
        %vm714 = vcmask 257024
        %715 = vst.msk [vmem:[%s177] sm:$0xf] %vm714, %v686
        %716 = vst.msk [vmem:[%s177 + $0x4] sm:$0xf] %vm714, %v687
        %717 = vst.msk [vmem:[%s177 + $0x8] sm:$0xf] %vm714, %v688
        %718 = vst.msk [vmem:[%s177 + $0xc] sm:$0xf] %vm714, %v689
        %719 = vst.msk [vmem:[%s177 + $0x10] sm:$0xf] %vm714, %v690
        %720 = vst.msk [vmem:[%s177 + $0x14] sm:$0xf] %vm714, %v691
        %721 = vst.msk [vmem:[%s177 + $0x18] sm:$0xf] %vm714, %v692
        %722 = vst.msk [vmem:[%s177 + $0x1c] sm:$0xf] %vm714, %v693
        %723 = vst.msk [vmem:[%s177 + $0x20] sm:$0xf] %vm714, %v694
        %724 = vst.msk [vmem:[%s177 + $0x24] sm:$0xf] %vm714, %v695
        %725 = vst.msk [vmem:[%s177 + $0x28] sm:$0xf] %vm714, %v696
        %726 = vst.msk [vmem:[%s177 + $0x2c] sm:$0xf] %vm714, %v697
        %727 = vst.msk [vmem:[%s177 + $0x30] sm:$0xf] %vm714, %v698
        %728 = vst.msk [vmem:[%s177 + $0x34] sm:$0xf] %vm714, %v699
        %729 = vst.msk [vmem:[%s177 + $0x38] sm:$0xf] %vm714, %v700
        %730 = vst.msk [vmem:[%s177 + $0x3c] sm:$0xf] %vm714, %v701
        %731 = vst.msk [vmem:[%s177 + $0x40] sm:$0xf] %vm714, %v702
        %732 = vst.msk [vmem:[%s177 + $0x44] sm:$0xf] %vm714, %v703
        %733 = vst.msk [vmem:[%s177 + $0x48] sm:$0xf] %vm714, %v704
        %734 = vst.msk [vmem:[%s177 + $0x4c] sm:$0xf] %vm714, %v705
        %735 = vst.msk [vmem:[%s177 + $0x50] sm:$0xf] %vm714, %v706
        %736 = vst.msk [vmem:[%s177 + $0x54] sm:$0xf] %vm714, %v707
        %737 = vst.msk [vmem:[%s177 + $0x58] sm:$0xf] %vm714, %v708
        %738 = vst.msk [vmem:[%s177 + $0x5c] sm:$0xf] %vm714, %v709
        %739 = vst.msk [vmem:[%s177 + $0x60] sm:$0xf] %vm714, %v710
        %740 = vst.msk [vmem:[%s177 + $0x64] sm:$0xf] %vm714, %v711
        %741 = vst.msk [vmem:[%s177 + $0x68] sm:$0xf] %vm714, %v712
        %742 = vst.msk [vmem:[%s177 + $0x6c] sm:$0xf] %vm714, %v713
        %s743 = sand.u32 %s90, 1
        %s744 = sand.u32 %s90, 1
        %s745 = smul.addr %s744, 112
        %s746 = scalar_lea.vmem [#allocation2], %s745
        // Predicated region
        $region33: #{encoder_forward.3} parent=31 // pred_check
          %p747 = pneg %p100
        $region34: #{encoder_forward.3} parent=31 // pred_check_branch
          %749 = sbr.rel (%p747) target = $region36
        $region35: #{encoder_forward.3} parent=31 // pred_region
          %s750 = smul.u32 28, %s14
          %s751 = ssub.s32 111, %s750
          %p752 = scmp.lt.s32.totalorder %s751, 28
          %s753 = scalar_select %p752, %s751, 28
          %s754 = smul.u32 4, %s753
          %p755 = scmp.ne.s32.totalorder 0, %s754
          %s756 = smul.addr %s750, 4
          %s757 = scalar_lea.vmem %s3, %s756
          // Predicated region
          $region37: #{encoder_forward.3} parent=35 // pred_check
            %p758 = pneg %p755
          $region38: #{encoder_forward.3} parent=35 // pred_check_branch
            %760 = sbr.rel (%p758) target = $region40
          $region39: #{encoder_forward.3} parent=35 // pred_region
            // Predicated region
            $region41: #{encoder_forward.3} parent=39 // pred_check
              _
            $region42: #{encoder_forward.3} parent=39 // pred_check_branch
              %762 = sbr.rel target = $region44
            $region43: #{encoder_forward.3} parent=39 // pred_region
              // Predicated region
              $region63: #{encoder_forward.3} parent=43 // pred_check
                _
              $region64: #{encoder_forward.3} parent=43 // pred_check_branch
                %867 = sbr.rel (0) target = $region66
              $region65: #{encoder_forward.3} parent=43 // pred_region
                %s869 = ssub.s32 16, 1
                %s870 = sdiv.u32.pop %s753, 28
                %s871 = srem.u32.pop %s753, 28
                // While loop
                $region67: #{encoder_forward.3} parent=65 // loop_pre_header
                  _
                $region68: #{encoder_forward.3} parent=65 // loop_header
                  %s873 = sphi 0, %s875
                  %p874 = scmp.ge.s32.totalorder %s873, %s870
                  %s878 = sphi 0, %s939
                  %s879 = sphi %s746, %s942
                  %s880 = sphi %s757, %s943
                $region69: #{encoder_forward.3} parent=65 // loop_header_branch
                  %877 = sbr.rel (%p874) target = $region73
                $region70: #{encoder_forward.3} parent=65 // loop_body
                  %v881 = vld [vmem:[%s879] sm:%s869]
                  %882 = vst [vmem:[%s880] sm:%s869] %v881
                  %v883 = vld [vmem:[%s879 + $0x4] sm:%s869]
                  %884 = vst [vmem:[%s880 + $0x4] sm:%s869] %v883
                  %v885 = vld [vmem:[%s879 + $0x8] sm:%s869]
                  %886 = vst [vmem:[%s880 + $0x8] sm:%s869] %v885
                  %v887 = vld [vmem:[%s879 + $0xc] sm:%s869]
                  %888 = vst [vmem:[%s880 + $0xc] sm:%s869] %v887
                  %v889 = vld [vmem:[%s879 + $0x10] sm:%s869]
                  %890 = vst [vmem:[%s880 + $0x10] sm:%s869] %v889
                  %v891 = vld [vmem:[%s879 + $0x14] sm:%s869]
                  %892 = vst [vmem:[%s880 + $0x14] sm:%s869] %v891
                  %v893 = vld [vmem:[%s879 + $0x18] sm:%s869]
                  %894 = vst [vmem:[%s880 + $0x18] sm:%s869] %v893
                  %v895 = vld [vmem:[%s879 + $0x1c] sm:%s869]
                  %896 = vst [vmem:[%s880 + $0x1c] sm:%s869] %v895
                  %v897 = vld [vmem:[%s879 + $0x20] sm:%s869]
                  %898 = vst [vmem:[%s880 + $0x20] sm:%s869] %v897
                  %v899 = vld [vmem:[%s879 + $0x24] sm:%s869]
                  %900 = vst [vmem:[%s880 + $0x24] sm:%s869] %v899
                  %v901 = vld [vmem:[%s879 + $0x28] sm:%s869]
                  %902 = vst [vmem:[%s880 + $0x28] sm:%s869] %v901
                  %v903 = vld [vmem:[%s879 + $0x2c] sm:%s869]
                  %904 = vst [vmem:[%s880 + $0x2c] sm:%s869] %v903
                  %v905 = vld [vmem:[%s879 + $0x30] sm:%s869]
                  %906 = vst [vmem:[%s880 + $0x30] sm:%s869] %v905
                  %v907 = vld [vmem:[%s879 + $0x34] sm:%s869]
                  %908 = vst [vmem:[%s880 + $0x34] sm:%s869] %v907
                  %v909 = vld [vmem:[%s879 + $0x38] sm:%s869]
                  %910 = vst [vmem:[%s880 + $0x38] sm:%s869] %v909
                  %v911 = vld [vmem:[%s879 + $0x3c] sm:%s869]
                  %912 = vst [vmem:[%s880 + $0x3c] sm:%s869] %v911
                  %v913 = vld [vmem:[%s879 + $0x40] sm:%s869]
                  %914 = vst [vmem:[%s880 + $0x40] sm:%s869] %v913
                  %v915 = vld [vmem:[%s879 + $0x44] sm:%s869]
                  %916 = vst [vmem:[%s880 + $0x44] sm:%s869] %v915
                  %v917 = vld [vmem:[%s879 + $0x48] sm:%s869]
                  %918 = vst [vmem:[%s880 + $0x48] sm:%s869] %v917
                  %v919 = vld [vmem:[%s879 + $0x4c] sm:%s869]
                  %920 = vst [vmem:[%s880 + $0x4c] sm:%s869] %v919
                  %v921 = vld [vmem:[%s879 + $0x50] sm:%s869]
                  %922 = vst [vmem:[%s880 + $0x50] sm:%s869] %v921
                  %v923 = vld [vmem:[%s879 + $0x54] sm:%s869]
                  %924 = vst [vmem:[%s880 + $0x54] sm:%s869] %v923
                  %v925 = vld [vmem:[%s879 + $0x58] sm:%s869]
                  %926 = vst [vmem:[%s880 + $0x58] sm:%s869] %v925
                  %v927 = vld [vmem:[%s879 + $0x5c] sm:%s869]
                  %928 = vst [vmem:[%s880 + $0x5c] sm:%s869] %v927
                  %v929 = vld [vmem:[%s879 + $0x60] sm:%s869]
                  %930 = vst [vmem:[%s880 + $0x60] sm:%s869] %v929
                  %v931 = vld [vmem:[%s879 + $0x64] sm:%s869]
                  %932 = vst [vmem:[%s880 + $0x64] sm:%s869] %v931
                  %v933 = vld [vmem:[%s879 + $0x68] sm:%s869]
                  %934 = vst [vmem:[%s880 + $0x68] sm:%s869] %v933
                  %v935 = vld [vmem:[%s879 + $0x6c] sm:%s869]
                  %936 = vst [vmem:[%s880 + $0x6c] sm:%s869] %v935
                  %s937 = sadd.s32 1, %s878
                  %p938 = scmp.ge.s32.totalorder %s937, %s870
                  %s939 = scalar_select %p938, 0, %s937
                  %s940 = smul.u32 %s939, 112
                  %s941 = smul.u32 %s939, 112
                  %s942 = scalar_lea.vmem %s746, %s940 [#allocation2]
                  %s943 = scalar_lea.vmem %s757, %s941
                $region71: #{encoder_forward.3} parent=65 // loop_footer
                  %s875 = sadd.s32 %s873, 1
                $region72: #{encoder_forward.3} parent=65 // loop_footer_branch
                  %872 = sbr.rel target = $region68
                $region73: #{encoder_forward.3} parent=65 // loop_exit
                  _
                %s944 = sdiv.u32.pop %s753, 28
                %s945 = srem.u32.pop %s753, 28
                %s946 = smul.u32 %s944, 28
                %s947 = smul.u32 4, %s946
                %s948 = scalar_lea.vmem %s746, %s947 [#allocation2]
                %s949 = smul.u32 4, %s946
                %s950 = scalar_lea.vmem %s757, %s949
                // While loop
                $region74: #{encoder_forward.3} parent=65 // loop_pre_header
                  _
                $region75: #{encoder_forward.3} parent=65 // loop_header
                  %s952 = sphi 0, %s954
                  %p953 = scmp.ge.s32.totalorder %s952, %s945
                  %s957 = sphi 0, %s964
                  %s958 = sphi %s948, %s967
                  %s959 = sphi %s950, %s968
                $region76: #{encoder_forward.3} parent=65 // loop_header_branch
                  %956 = sbr.rel (%p953) target = $region80
                $region77: #{encoder_forward.3} parent=65 // loop_body
                  %v960 = vld [vmem:[%s958] sm:%s869]
                  %961 = vst [vmem:[%s959] sm:%s869] %v960
                  %s962 = sadd.s32 1, %s957
                  %p963 = scmp.ge.s32.totalorder %s962, %s945
                  %s964 = scalar_select %p963, 0, %s962
                  %s965 = smul.u32 %s964, 4
                  %s966 = smul.u32 %s964, 4
                  %s967 = scalar_lea.vmem %s948, %s965 [#allocation2]
                  %s968 = scalar_lea.vmem %s950, %s966
                $region78: #{encoder_forward.3} parent=65 // loop_footer
                  %s954 = sadd.s32 %s952, 1
                $region79: #{encoder_forward.3} parent=65 // loop_footer_branch
                  %951 = sbr.rel target = $region75
                $region80: #{encoder_forward.3} parent=65 // loop_exit
                  _
              $region66: #{encoder_forward.3} parent=43 // pred_fallthru
                _
            $region44: #{encoder_forward.3} parent=39 // pred_fallthru
              _
            // Predicated region
            $region45: #{encoder_forward.3} parent=39 // pred_check
              _
            $region46: #{encoder_forward.3} parent=39 // pred_check_branch
              %764 = sbr.rel (0) target = $region48
            $region47: #{encoder_forward.3} parent=39 // pred_region
              %s766 = ssub.s32 16, 1
              %s767 = sdiv.u32.pop %s753, 28
              %s768 = srem.u32.pop %s753, 28
              // While loop
              $region49: #{encoder_forward.3} parent=47 // loop_pre_header
                _
              $region50: #{encoder_forward.3} parent=47 // loop_header
                %s770 = sphi 0, %s772
                %p771 = scmp.ge.s32.totalorder %s770, %s767
                %s775 = sphi 0, %s836
                %s776 = sphi %s746, %s839
                %s777 = sphi %s757, %s840
              $region51: #{encoder_forward.3} parent=47 // loop_header_branch
                %774 = sbr.rel (%p771) target = $region55
              $region52: #{encoder_forward.3} parent=47 // loop_body
                %v778 = vld [vmem:[%s776] sm:%s766]
                %779 = vst [vmem:[%s777] sm:%s766] %v778
                %v780 = vld [vmem:[%s776 + $0x4] sm:%s766]
                %781 = vst [vmem:[%s777 + $0x4] sm:%s766] %v780
                %v782 = vld [vmem:[%s776 + $0x8] sm:%s766]
                %783 = vst [vmem:[%s777 + $0x8] sm:%s766] %v782
                %v784 = vld [vmem:[%s776 + $0xc] sm:%s766]
                %785 = vst [vmem:[%s777 + $0xc] sm:%s766] %v784
                %v786 = vld [vmem:[%s776 + $0x10] sm:%s766]
                %787 = vst [vmem:[%s777 + $0x10] sm:%s766] %v786
                %v788 = vld [vmem:[%s776 + $0x14] sm:%s766]
                %789 = vst [vmem:[%s777 + $0x14] sm:%s766] %v788
                %v790 = vld [vmem:[%s776 + $0x18] sm:%s766]
                %791 = vst [vmem:[%s777 + $0x18] sm:%s766] %v790
                %v792 = vld [vmem:[%s776 + $0x1c] sm:%s766]
                %793 = vst [vmem:[%s777 + $0x1c] sm:%s766] %v792
                %v794 = vld [vmem:[%s776 + $0x20] sm:%s766]
                %795 = vst [vmem:[%s777 + $0x20] sm:%s766] %v794
                %v796 = vld [vmem:[%s776 + $0x24] sm:%s766]
                %797 = vst [vmem:[%s777 + $0x24] sm:%s766] %v796
                %v798 = vld [vmem:[%s776 + $0x28] sm:%s766]
                %799 = vst [vmem:[%s777 + $0x28] sm:%s766] %v798
                %v800 = vld [vmem:[%s776 + $0x2c] sm:%s766]
                %801 = vst [vmem:[%s777 + $0x2c] sm:%s766] %v800
                %v802 = vld [vmem:[%s776 + $0x30] sm:%s766]
                %803 = vst [vmem:[%s777 + $0x30] sm:%s766] %v802
                %v804 = vld [vmem:[%s776 + $0x34] sm:%s766]
                %805 = vst [vmem:[%s777 + $0x34] sm:%s766] %v804
                %v806 = vld [vmem:[%s776 + $0x38] sm:%s766]
                %807 = vst [vmem:[%s777 + $0x38] sm:%s766] %v806
                %v808 = vld [vmem:[%s776 + $0x3c] sm:%s766]
                %809 = vst [vmem:[%s777 + $0x3c] sm:%s766] %v808
                %v810 = vld [vmem:[%s776 + $0x40] sm:%s766]
                %811 = vst [vmem:[%s777 + $0x40] sm:%s766] %v810
                %v812 = vld [vmem:[%s776 + $0x44] sm:%s766]
                %813 = vst [vmem:[%s777 + $0x44] sm:%s766] %v812
                %v814 = vld [vmem:[%s776 + $0x48] sm:%s766]
                %815 = vst [vmem:[%s777 + $0x48] sm:%s766] %v814
                %v816 = vld [vmem:[%s776 + $0x4c] sm:%s766]
                %817 = vst [vmem:[%s777 + $0x4c] sm:%s766] %v816
                %v818 = vld [vmem:[%s776 + $0x50] sm:%s766]
                %819 = vst [vmem:[%s777 + $0x50] sm:%s766] %v818
                %v820 = vld [vmem:[%s776 + $0x54] sm:%s766]
                %821 = vst [vmem:[%s777 + $0x54] sm:%s766] %v820
                %v822 = vld [vmem:[%s776 + $0x58] sm:%s766]
                %823 = vst [vmem:[%s777 + $0x58] sm:%s766] %v822
                %v824 = vld [vmem:[%s776 + $0x5c] sm:%s766]
                %825 = vst [vmem:[%s777 + $0x5c] sm:%s766] %v824
                %v826 = vld [vmem:[%s776 + $0x60] sm:%s766]
                %827 = vst [vmem:[%s777 + $0x60] sm:%s766] %v826
                %v828 = vld [vmem:[%s776 + $0x64] sm:%s766]
                %829 = vst [vmem:[%s777 + $0x64] sm:%s766] %v828
                %v830 = vld [vmem:[%s776 + $0x68] sm:%s766]
                %831 = vst [vmem:[%s777 + $0x68] sm:%s766] %v830
                %v832 = vld [vmem:[%s776 + $0x6c] sm:%s766]
                %833 = vst [vmem:[%s777 + $0x6c] sm:%s766] %v832
                %s834 = sadd.s32 1, %s775
                %p835 = scmp.ge.s32.totalorder %s834, %s767
                %s836 = scalar_select %p835, 0, %s834
                %s837 = smul.u32 %s836, 112
                %s838 = smul.u32 %s836, 112
                %s839 = scalar_lea.vmem %s746, %s837 [#allocation2]
                %s840 = scalar_lea.vmem %s757, %s838
              $region53: #{encoder_forward.3} parent=47 // loop_footer
                %s772 = sadd.s32 %s770, 1
              $region54: #{encoder_forward.3} parent=47 // loop_footer_branch
                %769 = sbr.rel target = $region50
              $region55: #{encoder_forward.3} parent=47 // loop_exit
                _
              %s841 = sdiv.u32.pop %s753, 28
              %s842 = srem.u32.pop %s753, 28
              %s843 = smul.u32 %s841, 28
              %s844 = smul.u32 4, %s843
              %s845 = scalar_lea.vmem %s746, %s844 [#allocation2]
              %s846 = smul.u32 4, %s843
              %s847 = scalar_lea.vmem %s757, %s846
              // While loop
              $region56: #{encoder_forward.3} parent=47 // loop_pre_header
                _
              $region57: #{encoder_forward.3} parent=47 // loop_header
                %s849 = sphi 0, %s851
                %p850 = scmp.ge.s32.totalorder %s849, %s842
                %s854 = sphi 0, %s861
                %s855 = sphi %s845, %s864
                %s856 = sphi %s847, %s865
              $region58: #{encoder_forward.3} parent=47 // loop_header_branch
                %853 = sbr.rel (%p850) target = $region62
              $region59: #{encoder_forward.3} parent=47 // loop_body
                %v857 = vld [vmem:[%s855] sm:%s766]
                %858 = vst [vmem:[%s856] sm:%s766] %v857
                %s859 = sadd.s32 1, %s854
                %p860 = scmp.ge.s32.totalorder %s859, %s842
                %s861 = scalar_select %p860, 0, %s859
                %s862 = smul.u32 %s861, 4
                %s863 = smul.u32 %s861, 4
                %s864 = scalar_lea.vmem %s845, %s862 [#allocation2]
                %s865 = scalar_lea.vmem %s847, %s863
              $region60: #{encoder_forward.3} parent=47 // loop_footer
                %s851 = sadd.s32 %s849, 1
              $region61: #{encoder_forward.3} parent=47 // loop_footer_branch
                %848 = sbr.rel target = $region57
              $region62: #{encoder_forward.3} parent=47 // loop_exit
                _
            $region48: #{encoder_forward.3} parent=39 // pred_fallthru
              _
          $region40: #{encoder_forward.3} parent=35 // pred_fallthru
            _
          %969 = vnop
        $region36: #{encoder_forward.3} parent=31 // pred_fallthru
          _
      $region32: #{encoder_forward.3} parent=5 // pred_fallthru
        _
      %p970 = scmp.le.s32.totalorder 2, %s9
      // Predicated region
      $region81: #{encoder_forward.3} parent=5 // pred_check
        %p971 = pneg %p970
      $region82: #{encoder_forward.3} parent=5 // pred_check_branch
        %973 = sbr.rel (%p971) target = $region84
      $region83: #{encoder_forward.3} parent=5 // pred_region
        %s974 = ssub.s32 %s9, 2
        // Predicated region
        $region85: #{encoder_forward.3} parent=83 // pred_check
          %p975 = pneg %p106
        $region86: #{encoder_forward.3} parent=83 // pred_check_branch
          %977 = sbr.rel (%p975) target = $region88
        $region87: #{encoder_forward.3} parent=83 // pred_region
          %s978 = sand.u32 %s91, 1
          %s979 = sand.u32 %s91, 1
          %s980 = smul.addr %s979, 112
          %s981 = scalar_lea.vmem [#allocation2], %s980
        $region88: #{encoder_forward.3} parent=83 // pred_fallthru
          _
      $region84: #{encoder_forward.3} parent=5 // pred_fallthru
        _
    $region6: #{encoder_forward.3} parent=1 // loop_footer
      %s13 = sadd.s32 1, %s9
    $region7: #{encoder_forward.3} parent=1 // loop_footer_branch
      %8 = sbr.rel target = $region3
    $region8: #{encoder_forward.3} parent=1 // loop_exit
      _

// kernel: encoder_forward.4
$region0: #{encoder_forward.4}
  #allocation0 [shape = 'u32[]', space=smem, size = 0x4, offset = 0x4, fixed_abs, tag = 'smem constant byte address 0x4 - core index']
  #allocation1 [shape = 'u32[72,128]{1,0:T(1,128)}', space=vmem, size = 0x9000, scoped, tag = 'internal scratch']
  %s0 = inlined_call_operand.vmem [shape: bf16[242,512], index: 0, kind: input, shape index: {}]
  %s1 = inlined_call_operand.vmem [shape: bf16[512,64], index: 1, kind: input, shape index: {}]
  %s2 = inlined_call_operand.vmem [shape: f32[1,64], index: 2, kind: input, shape index: {}]
  %s3 = inlined_call_operand.vmem [shape: bf16[242,64], index: 3, kind: output, shape index: {}]
  %s4 = sld [smem:[#allocation0]]
  $region89: #{encoder_forward.4} parent=0
    _
  %s6 = ssub.s32 1, %s4
  %s7 = scalar_select 0, %s6, %s4
  $region1: #{encoder_forward.4} parent=0
    #allocation2 [shape = 'u8[32768]{0}', space=vmem, size = 0x8000, scoped, tag = 'output window, operand 0']
    loop: start=0, step=1, limit=6
    $region2: #{encoder_forward.4} parent=1 // loop_pre_header
      _
    $region3: #{encoder_forward.4} parent=1 // loop_header
      %s9 = sphi 0, %s13
      %p10 = scmp.ge.s32.totalorder %s9, 6
      %s19 = sphi 0, %s21
      %s22 = sphi 0, %s19
      %s23 = sphi 0, %s22
      %s39 = sphi 0, %s23
      %s43 = sphi 0, %s43
      %s45 = sphi 0, %s43
      %s46 = sphi 0, %s45
      %s60 = sphi 0, %s46
      %s64 = sphi 0, %s64
      %s66 = sphi 0, %s64
      %s67 = sphi 0, %s66
      %s81 = sphi 0, %s67
      %s87 = sphi 0, %s89
      %s90 = sphi 0, %s87
      %s91 = sphi 0, %s90
      %s107 = sphi 0, %s91
    $region4: #{encoder_forward.4} parent=1 // loop_header_branch
      %12 = sbr.rel (%p10) target = $region8
    $region5: #{encoder_forward.4} parent=1 // loop_body
      %s14 = ssub.s32 %s9, 1
      %s15 = ssub.s32 %s9, 2
      %s16 = sadd.s32 %s9, 1
      %s17 = ssub.s32 %s9, %s16
      %p18 = scmp.eq.s32.totalorder %s17, 0
      %s20 = sadd.s32 %s19, 1
      %s21 = scalar_select %p18, %s19, %s20
      %p24 = pneg %p18
      %p25 = scmp.eq.s32.totalorder %s9, 3
      %p26 = por %p24, %p25
      %p27 = scmp.ne.s32.totalorder %s19, %s22
      %p28 = scmp.eq.s32.totalorder %s9, 0
      %p29 = por %p27, %p28
      %p30 = scmp.ne.s32.totalorder %s19, %s22
      %p31 = scmp.eq.s32.totalorder %s14, 3
      %p32 = por %p30, %p31
      %p33 = scmp.ne.s32.totalorder %s22, %s23
      %p34 = scmp.eq.s32.totalorder %s14, 0
      %p35 = por %p33, %p34
      %p36 = scmp.ne.s32.totalorder %s22, %s23
      %p37 = scmp.eq.s32.totalorder %s15, 3
      %p38 = por %p36, %p37
      %p40 = scmp.ne.s32.totalorder %s23, %s39
      %p41 = scmp.eq.s32.totalorder %s15, 0
      %p42 = por %p40, %p41
      %s44 = sadd.s32 %s43, 1
      %p47 = scmp.eq.s32.totalorder %s9, 3
      %p48 = scmp.ne.s32.totalorder %s43, %s45
      %p49 = scmp.eq.s32.totalorder %s9, 0
      %p50 = por %p48, %p49
      %p51 = scmp.ne.s32.totalorder %s43, %s45
      %p52 = scmp.eq.s32.totalorder %s14, 3
      %p53 = por %p51, %p52
      %p54 = scmp.ne.s32.totalorder %s45, %s46
      %p55 = scmp.eq.s32.totalorder %s14, 0
      %p56 = por %p54, %p55
      %p57 = scmp.ne.s32.totalorder %s45, %s46
      %p58 = scmp.eq.s32.totalorder %s15, 3
      %p59 = por %p57, %p58
      %p61 = scmp.ne.s32.totalorder %s46, %s60
      %p62 = scmp.eq.s32.totalorder %s15, 0
      %p63 = por %p61, %p62
      %s65 = sadd.s32 %s64, 1
      %p68 = scmp.eq.s32.totalorder %s9, 3
      %p69 = scmp.ne.s32.totalorder %s64, %s66
      %p70 = scmp.eq.s32.totalorder %s9, 0
      %p71 = por %p69, %p70
      %p72 = scmp.ne.s32.totalorder %s64, %s66
      %p73 = scmp.eq.s32.totalorder %s14, 3
      %p74 = por %p72, %p73
      %p75 = scmp.ne.s32.totalorder %s66, %s67
      %p76 = scmp.eq.s32.totalorder %s14, 0
      %p77 = por %p75, %p76
      %p78 = scmp.ne.s32.totalorder %s66, %s67
      %p79 = scmp.eq.s32.totalorder %s15, 3
      %p80 = por %p78, %p79
      %p82 = scmp.ne.s32.totalorder %s67, %s81
      %p83 = scmp.eq.s32.totalorder %s15, 0
      %p84 = por %p82, %p83
      %s85 = ssub.s32 %s9, %s16
      %p86 = scmp.eq.s32.totalorder %s85, 0
      %s88 = sadd.s32 %s87, 1
      %s89 = scalar_select %p86, %s87, %s88
      %p92 = pneg %p86
      %p93 = scmp.eq.s32.totalorder %s9, 3
      %p94 = por %p92, %p93
      %p95 = scmp.ne.s32.totalorder %s87, %s90
      %p96 = scmp.eq.s32.totalorder %s9, 0
      %p97 = por %p95, %p96
      %p98 = scmp.ne.s32.totalorder %s87, %s90
      %p99 = scmp.eq.s32.totalorder %s14, 3
      %p100 = por %p98, %p99
      %p101 = scmp.ne.s32.totalorder %s90, %s91
      %p102 = scmp.eq.s32.totalorder %s14, 0
      %p103 = por %p101, %p102
      %p104 = scmp.ne.s32.totalorder %s90, %s91
      %p105 = scmp.eq.s32.totalorder %s15, 3
      %p106 = por %p104, %p105
      %p108 = scmp.ne.s32.totalorder %s91, %s107
      %p109 = scmp.eq.s32.totalorder %s15, 0
      %p110 = por %p108, %p109
      %p111 = scmp.le.s32.totalorder 1, %s9
      %p112 = scmp.lt.s32.totalorder %s9, 5
      %p113 = pnand %p111, %p112
      %p114 = pneg %p113
      // Predicated region
      $region9: #{encoder_forward.4} parent=5 // pred_check
        _
      $region10: #{encoder_forward.4} parent=5 // pred_check_branch
        %116 = sbr.rel (%p113) target = $region12
      $region11: #{encoder_forward.4} parent=5 // pred_region
        %s117 = ssub.s32 %s9, 1
        // Predicated region
        $region13: #{encoder_forward.4} parent=11 // pred_check
          %p118 = pneg %p56
        $region14: #{encoder_forward.4} parent=11 // pred_check_branch
          %120 = sbr.rel (%p118) target = $region16
        $region15: #{encoder_forward.4} parent=11 // pred_region
          _
        $region16: #{encoder_forward.4} parent=11 // pred_fallthru
          _
        // Predicated region
        $region17: #{encoder_forward.4} parent=11 // pred_check
          %p121 = pneg %p77
        $region18: #{encoder_forward.4} parent=11 // pred_check_branch
          %123 = sbr.rel (%p121) target = $region20
        $region19: #{encoder_forward.4} parent=11 // pred_region
          _
        $region20: #{encoder_forward.4} parent=11 // pred_fallthru
          _
      $region12: #{encoder_forward.4} parent=5 // pred_fallthru
        _
      %p124 = scmp.lt.s32.totalorder %s9, 4
      // Predicated region
      $region21: #{encoder_forward.4} parent=5 // pred_check
        %p125 = pneg %p124
      $region22: #{encoder_forward.4} parent=5 // pred_check_branch
        %127 = sbr.rel (%p125) target = $region24
      $region23: #{encoder_forward.4} parent=5 // pred_region
        // Predicated region
        $region25: #{encoder_forward.4} parent=23 // pred_check
          %p128 = pneg %p29
        $region26: #{encoder_forward.4} parent=23 // pred_check_branch
          %130 = sbr.rel (%p128) target = $region28
        $region27: #{encoder_forward.4} parent=23 // pred_region
          %s131 = smul.u32 8, %s9
          %s132 = ssub.s32 31, %s131
          %p133 = scmp.lt.s32.totalorder %s132, 8
          %s134 = scalar_select %p133, %s132, 8
          %s135 = smul.u32 4, %s134
          %s136 = smul.u32 %s135, 4
          %p137 = scmp.lt.s32.totalorder %s131, 30
          %s138 = scalar_select %p137, %s131, 30
          %s139 = smul.addr %s138, 4
          %s140 = smul.addr %s139, 4
          %s141 = scalar_lea.vmem %s0, %s140
          %s142 = smul.u32 8, %s9
          %s143 = ssub.s32 31, %s142
          %p144 = scmp.lt.s32.totalorder %s143, 8
          %s145 = scalar_select %p144, %s143, 8
          %s146 = smul.u32 4, %s145
          %s147 = smul.u32 %s146, 4
        $region28: #{encoder_forward.4} parent=23 // pred_fallthru
          _
      $region24: #{encoder_forward.4} parent=5 // pred_fallthru
        _
      %p148 = scmp.le.s32.totalorder 1, %s9
      %p149 = scmp.lt.s32.totalorder %s9, 5
      %p150 = pnand %p148, %p149
      %p151 = pneg %p150
      // Predicated region
      $region29: #{encoder_forward.4} parent=5 // pred_check
        _
      $region30: #{encoder_forward.4} parent=5 // pred_check_branch
        %153 = sbr.rel (%p150) target = $region32
      $region31: #{encoder_forward.4} parent=5 // pred_region
        %s154 = ssub.s32 %s9, 1
        %s155 = smul.u32 8, %s14
        %s156 = ssub.s32 31, %s155
        %p157 = scmp.lt.s32.totalorder %s156, 8
        %s158 = scalar_select %p157, %s156, 8
        %s159 = smul.u32 4, %s158
        %s160 = smul.u32 %s159, 4
        %p161 = scmp.lt.s32.totalorder %s155, 30
        %s162 = scalar_select %p161, %s155, 30
        %s163 = smul.addr %s162, 4
        %s164 = smul.addr %s163, 4
        %s165 = scalar_lea.vmem %s0, %s164
        %p166 = pneg %p35
        %p167 = pneg %p32
        %p168 = pneg %p56
        %p169 = pneg %p53
        %p170 = pneg %p77
        %p171 = pneg %p74
        %p172 = pneg %p103
        %p173 = pneg %p100
        %s174 = sand.u32 %s90, 1
        %s175 = sand.u32 %s90, 1
        %s176 = smul.addr %s175, 32
        %s177 = scalar_lea.vmem [#allocation2], %s176
        %s178 = smul.u32 8, %s14
        %s179 = ssub.s32 31, %s178
        %p180 = scmp.lt.s32.totalorder %s179, 8
        %s181 = scalar_select %p180, %s179, 8
        %s182 = smul.u32 4, %s181
        %s183 = smul.u32 %s182, 4
        %p184 = scmp.lt.s32.totalorder %s178, 30
        %s185 = scalar_select %p184, %s178, 30
        %s186 = smul.addr %s185, 4
        %s187 = smul.addr %s186, 4
        %s188 = scalar_lea.vmem %s0, %s187
        %s189 = smul.u32 8, %s14
        %s190 = ssub.s32 31, %s189
        %p191 = scmp.lt.s32.totalorder %s190, 8
        %s192 = scalar_select %p191, %s190, 8
        %s193 = smul.u32 4, %s192
        %s194 = smul.u32 %s193, 4
        %s195 = smul.u32 8, %s14
        %s196 = ssub.s32 31, %s195
        %p197 = scmp.lt.s32.totalorder %s196, 8
        %s198 = scalar_select %p197, %s196, 8
        %s199 = smul.u32 4, %s198
        %v200 = vld [vmem:[%s188] sm:$0xff]
        %v201 = vld [vmem:[%s188 + $0x8] sm:$0xff]
        %v202 = vld [vmem:[%s188 + $0x10] sm:$0xff]
        %v203 = vld [vmem:[%s188 + $0x18] sm:$0xff]
        %v204 = vld [vmem:[%s188 + $0x20] sm:$0xff]
        %v205 = vld [vmem:[%s188 + $0x28] sm:$0xff]
        %v206 = vld [vmem:[%s188 + $0x30] sm:$0xff]
        %v207 = vld [vmem:[%s188 + $0x38] sm:$0xff]
        %v208 = vld [vmem:[%s188 + $0x40] sm:$0xff]
        %v209 = vld [vmem:[%s188 + $0x48] sm:$0xff]
        %v210 = vld [vmem:[%s188 + $0x50] sm:$0xff]
        %v211 = vld [vmem:[%s188 + $0x58] sm:$0xff]
        %v212 = vld [vmem:[%s188 + $0x60] sm:$0xff]
        %v213 = vld [vmem:[%s188 + $0x68] sm:$0xff]
        %v214 = vld [vmem:[%s188 + $0x70] sm:$0xff]
        %v215 = vld [vmem:[%s188 + $0x78] sm:$0xff]
        %v216 = vld [vmem:[%s1] sm:$0xf]
        %v217 = vld [vmem:[%s1 + $0x4] sm:$0xf]
        %v218 = vld [vmem:[%s1 + $0x8] sm:$0xf]
        %v219 = vld [vmem:[%s1 + $0xc] sm:$0xf]
        %v220 = vld [vmem:[%s1 + $0x10] sm:$0xf]
        %v221 = vld [vmem:[%s1 + $0x14] sm:$0xf]
        %v222 = vld [vmem:[%s1 + $0x18] sm:$0xf]
        %v223 = vld [vmem:[%s1 + $0x1c] sm:$0xf]
        %v224 = vld [vmem:[%s1 + $0x20] sm:$0xf]
        %v225 = vld [vmem:[%s1 + $0x24] sm:$0xf]
        %v226 = vld [vmem:[%s1 + $0x28] sm:$0xf]
        %v227 = vld [vmem:[%s1 + $0x2c] sm:$0xf]
        %v228 = vld [vmem:[%s1 + $0x30] sm:$0xf]
        %v229 = vld [vmem:[%s1 + $0x34] sm:$0xf]
        %v230 = vld [vmem:[%s1 + $0x38] sm:$0xf]
        %v231 = vld [vmem:[%s1 + $0x3c] sm:$0xf]
        %v232 = vld [vmem:[%s1 + $0x40] sm:$0xf]
        %v233 = vld [vmem:[%s1 + $0x44] sm:$0xf]
        %v234 = vld [vmem:[%s1 + $0x48] sm:$0xf]
        %v235 = vld [vmem:[%s1 + $0x4c] sm:$0xf]
        %v236 = vld [vmem:[%s1 + $0x50] sm:$0xf]
        %v237 = vld [vmem:[%s1 + $0x54] sm:$0xf]
        %v238 = vld [vmem:[%s1 + $0x58] sm:$0xf]
        %v239 = vld [vmem:[%s1 + $0x5c] sm:$0xf]
        %v240 = vld [vmem:[%s1 + $0x60] sm:$0xf]
        %v241 = vld [vmem:[%s1 + $0x64] sm:$0xf]
        %v242 = vld [vmem:[%s1 + $0x68] sm:$0xf]
        %v243 = vld [vmem:[%s1 + $0x6c] sm:$0xf]
        %v244 = vld [vmem:[%s1 + $0x70] sm:$0xf]
        %v245 = vld [vmem:[%s1 + $0x74] sm:$0xf]
        %v246 = vld [vmem:[%s1 + $0x78] sm:$0xf]
        %v247 = vld [vmem:[%s1 + $0x7c] sm:$0xf]
        %v248 = vld [vmem:[%s1 + $0x80] sm:$0xf]
        %v249 = vld [vmem:[%s1 + $0x84] sm:$0xf]
        %v250 = vld [vmem:[%s1 + $0x88] sm:$0xf]
        %v251 = vld [vmem:[%s1 + $0x8c] sm:$0xf]
        %v252 = vld [vmem:[%s1 + $0x90] sm:$0xf]
        %v253 = vld [vmem:[%s1 + $0x94] sm:$0xf]
        %v254 = vld [vmem:[%s1 + $0x98] sm:$0xf]
        %v255 = vld [vmem:[%s1 + $0x9c] sm:$0xf]
        %v256 = vld [vmem:[%s1 + $0xa0] sm:$0xf]
        %v257 = vld [vmem:[%s1 + $0xa4] sm:$0xf]
        %v258 = vld [vmem:[%s1 + $0xa8] sm:$0xf]
        %v259 = vld [vmem:[%s1 + $0xac] sm:$0xf]
        %v260 = vld [vmem:[%s1 + $0xb0] sm:$0xf]
        %v261 = vld [vmem:[%s1 + $0xb4] sm:$0xf]
        %v262 = vld [vmem:[%s1 + $0xb8] sm:$0xf]
        %v263 = vld [vmem:[%s1 + $0xbc] sm:$0xf]
        %v264 = vld [vmem:[%s1 + $0xc0] sm:$0xf]
        %v265 = vld [vmem:[%s1 + $0xc4] sm:$0xf]
        %v266 = vld [vmem:[%s1 + $0xc8] sm:$0xf]
        %v267 = vld [vmem:[%s1 + $0xcc] sm:$0xf]
        %v268 = vld [vmem:[%s1 + $0xd0] sm:$0xf]
        %v269 = vld [vmem:[%s1 + $0xd4] sm:$0xf]
        %v270 = vld [vmem:[%s1 + $0xd8] sm:$0xf]
        %v271 = vld [vmem:[%s1 + $0xdc] sm:$0xf]
        %v272 = vld [vmem:[%s1 + $0xe0] sm:$0xf]
        %v273 = vld [vmem:[%s1 + $0xe4] sm:$0xf]
        %v274 = vld [vmem:[%s1 + $0xe8] sm:$0xf]
        %v275 = vld [vmem:[%s1 + $0xec] sm:$0xf]
        %v276 = vld [vmem:[%s1 + $0xf0] sm:$0xf]
        %v277 = vld [vmem:[%s1 + $0xf4] sm:$0xf]
        %v278 = vld [vmem:[%s1 + $0xf8] sm:$0xf]
        %v279 = vld [vmem:[%s1 + $0xfc] sm:$0xf]
        %v280 = vld [vmem:[%s2] sm:$0x1]
        %v282 = vperm.slane %v280, 0
        %v300 = vunpack.c.l.b16 %v200
        %v301 = vunpack.c.h.b16 %v200
        %v302 = vunpack.c.l.b16 %v201
        %v303 = vunpack.c.h.b16 %v201
        %v304 = vunpack.c.l.b16 %v202
        %v305 = vunpack.c.h.b16 %v202
        %v306 = vunpack.c.l.b16 %v203
        %v307 = vunpack.c.h.b16 %v203
        %v308 = vunpack.c.l.b16 %v204
        %v309 = vunpack.c.h.b16 %v204
        %v310 = vunpack.c.l.b16 %v205
        %v311 = vunpack.c.h.b16 %v205
        %v312 = vunpack.c.l.b16 %v206
        %v313 = vunpack.c.h.b16 %v206
        %v314 = vunpack.c.l.b16 %v207
        %v315 = vunpack.c.h.b16 %v207
        %v316 = vunpack.c.l.b16 %v208
        %v317 = vunpack.c.h.b16 %v208
        %v318 = vunpack.c.l.b16 %v209
        %v319 = vunpack.c.h.b16 %v209
        %v320 = vunpack.c.l.b16 %v210
        %v321 = vunpack.c.h.b16 %v210
        %v322 = vunpack.c.l.b16 %v211
        %v323 = vunpack.c.h.b16 %v211
        %v324 = vunpack.c.l.b16 %v212
        %v325 = vunpack.c.h.b16 %v212
        %v326 = vunpack.c.l.b16 %v213
        %v327 = vunpack.c.h.b16 %v213
        %v328 = vunpack.c.l.b16 %v214
        %v329 = vunpack.c.h.b16 %v214
        %v330 = vunpack.c.l.b16 %v215
        %v331 = vunpack.c.h.b16 %v215
        %v332 = vpack.c.b16 %v304, %v300
        %v333 = vpack.c.b16 %v305, %v301
        %v334 = vpack.c.b16 %v306, %v302
        %v335 = vpack.c.b16 %v307, %v303
        %v336 = vpack.c.b16 %v312, %v308
        %v337 = vpack.c.b16 %v313, %v309
        %v338 = vpack.c.b16 %v314, %v310
        %v339 = vpack.c.b16 %v315, %v311
        %v340 = vpack.c.b16 %v320, %v316
        %v341 = vpack.c.b16 %v321, %v317
        %v342 = vpack.c.b16 %v322, %v318
        %v343 = vpack.c.b16 %v323, %v319
        %v344 = vpack.c.b16 %v328, %v324
        %v345 = vpack.c.b16 %v329, %v325
        %v346 = vpack.c.b16 %v330, %v326
        %v347 = vpack.c.b16 %v331, %v327
        %v428 = vunpack.c.l.b16 %v216
        %v429 = vunpack.c.l.b16 %v217
        %v430 = vunpack.c.l.b16 %v218
        %v431 = vunpack.c.l.b16 %v219
        %v432 = vunpack.c.l.b16 %v220
        %v433 = vunpack.c.l.b16 %v221
        %v434 = vunpack.c.l.b16 %v222
        %v435 = vunpack.c.l.b16 %v223
        %v436 = vunpack.c.l.b16 %v224
        %v437 = vunpack.c.l.b16 %v225
        %v438 = vunpack.c.l.b16 %v226
        %v439 = vunpack.c.l.b16 %v227
        %v440 = vunpack.c.l.b16 %v228
        %v441 = vunpack.c.l.b16 %v229
        %v442 = vunpack.c.l.b16 %v230
        %v443 = vunpack.c.l.b16 %v231
        %v444 = vunpack.c.l.b16 %v232
        %v445 = vunpack.c.l.b16 %v233
        %v446 = vunpack.c.l.b16 %v234
        %v447 = vunpack.c.l.b16 %v235
        %v448 = vunpack.c.l.b16 %v236
        %v449 = vunpack.c.l.b16 %v237
        %v450 = vunpack.c.l.b16 %v238
        %v451 = vunpack.c.l.b16 %v239
        %v452 = vunpack.c.l.b16 %v240
        %v453 = vunpack.c.l.b16 %v241
        %v454 = vunpack.c.l.b16 %v242
        %v455 = vunpack.c.l.b16 %v243
        %v456 = vunpack.c.l.b16 %v244
        %v457 = vunpack.c.l.b16 %v245
        %v458 = vunpack.c.l.b16 %v246
        %v459 = vunpack.c.l.b16 %v247
        %v460 = vunpack.c.l.b16 %v248
        %v461 = vunpack.c.l.b16 %v249
        %v462 = vunpack.c.l.b16 %v250
        %v463 = vunpack.c.l.b16 %v251
        %v464 = vunpack.c.l.b16 %v252
        %v465 = vunpack.c.l.b16 %v253
        %v466 = vunpack.c.l.b16 %v254
        %v467 = vunpack.c.l.b16 %v255
        %v468 = vunpack.c.l.b16 %v256
        %v469 = vunpack.c.l.b16 %v257
        %v470 = vunpack.c.l.b16 %v258
        %v471 = vunpack.c.l.b16 %v259
        %v472 = vunpack.c.l.b16 %v260
        %v473 = vunpack.c.l.b16 %v261
        %v474 = vunpack.c.l.b16 %v262
        %v475 = vunpack.c.l.b16 %v263
        %v476 = vunpack.c.l.b16 %v264
        %v477 = vunpack.c.l.b16 %v265
        %v478 = vunpack.c.l.b16 %v266
        %v479 = vunpack.c.l.b16 %v267
        %v480 = vunpack.c.l.b16 %v268
        %v481 = vunpack.c.l.b16 %v269
        %v482 = vunpack.c.l.b16 %v270
        %v483 = vunpack.c.l.b16 %v271
        %v484 = vunpack.c.l.b16 %v272
        %v485 = vunpack.c.l.b16 %v273
        %v486 = vunpack.c.l.b16 %v274
        %v487 = vunpack.c.l.b16 %v275
        %v488 = vunpack.c.l.b16 %v276
        %v489 = vunpack.c.l.b16 %v277
        %v490 = vunpack.c.l.b16 %v278
        %v491 = vunpack.c.l.b16 %v279
        %v492 = vpack.c.b16 %v429, %v428
        %v493 = vpack.c.b16 %v431, %v430
        %v494 = vpack.c.b16 %v433, %v432
        %v495 = vpack.c.b16 %v435, %v434
        %v496 = vpack.c.b16 %v437, %v436
        %v497 = vpack.c.b16 %v439, %v438
        %v498 = vpack.c.b16 %v441, %v440
        %v499 = vpack.c.b16 %v443, %v442
        %v500 = vpack.c.b16 %v445, %v444
        %v501 = vpack.c.b16 %v447, %v446
        %v502 = vpack.c.b16 %v449, %v448
        %v503 = vpack.c.b16 %v451, %v450
        %v504 = vpack.c.b16 %v453, %v452
        %v505 = vpack.c.b16 %v455, %v454
        %v506 = vpack.c.b16 %v457, %v456
        %v507 = vpack.c.b16 %v459, %v458
        %v508 = vpack.c.b16 %v461, %v460
        %v509 = vpack.c.b16 %v463, %v462
        %v510 = vpack.c.b16 %v465, %v464
        %v511 = vpack.c.b16 %v467, %v466
        %v512 = vpack.c.b16 %v469, %v468
        %v513 = vpack.c.b16 %v471, %v470
        %v514 = vpack.c.b16 %v473, %v472
        %v515 = vpack.c.b16 %v475, %v474
        %v516 = vpack.c.b16 %v477, %v476
        %v517 = vpack.c.b16 %v479, %v478
        %v518 = vpack.c.b16 %v481, %v480
        %v519 = vpack.c.b16 %v483, %v482
        %v520 = vpack.c.b16 %v485, %v484
        %v521 = vpack.c.b16 %v487, %v486
        %v522 = vpack.c.b16 %v489, %v488
        %v523 = vpack.c.b16 %v491, %v490
        %556 = vmatpush.bf16.msra.mxu0 %v499
        %557 = vmatpush.bf16.msra.mxu0 %v498
        %558 = vmatpush.bf16.msra.mxu0 %v497
        %559 = vmatpush.bf16.msra.mxu0 %v496
        %560 = vmatpush.bf16.msra.mxu0 %v495
        %561 = vmatpush.bf16.msra.mxu0 %v494
        %562 = vmatpush.bf16.msra.mxu0 %v493
        %563 = vmatpush.bf16.msra.mxu0 %v492
        %564 = vmatmul.bf16.gmra.mxu0 %v332
        %v565 = vpop.f32.mrf.mxu0
        %v566 = vadd.f32 %v282, %v565
        %v567 = vpop.f32.mrf.mxu0
        %v568 = vadd.f32 %v282, %v567
        %569 = vmatmul.bf16.gmra.mxu0 %v336
        %v570 = vpop.f32.mrf.mxu0
        %v571 = vadd.f32 %v282, %v570
        %v572 = vpop.f32.mrf.mxu0
        %v573 = vadd.f32 %v282, %v572
        %574 = vmatmul.bf16.gmra.mxu0 %v340
        %v575 = vpop.f32.mrf.mxu0
        %v576 = vadd.f32 %v282, %v575
        %v577 = vpop.f32.mrf.mxu0
        %v578 = vadd.f32 %v282, %v577
        %579 = vmatmul.bf16.gmra.mxu0 %v344
        %v580 = vpop.f32.mrf.mxu0
        %v581 = vadd.f32 %v282, %v580
        %v582 = vpop.f32.mrf.mxu0
        %v583 = vadd.f32 %v282, %v582
        %584 = vdwg.mxu0
        %585 = vmatpush.bf16.msra.mxu0 %v507
        %586 = vmatpush.bf16.msra.mxu0 %v506
        %587 = vmatpush.bf16.msra.mxu0 %v505
        %588 = vmatpush.bf16.msra.mxu0 %v504
        %589 = vmatpush.bf16.msra.mxu0 %v503
        %590 = vmatpush.bf16.msra.mxu0 %v502
        %591 = vmatpush.bf16.msra.mxu0 %v501
        %592 = vmatpush.bf16.msra.mxu0 %v500
        %593 = vmatmul.bf16.gmra.mxu0 %v333
        %v594 = vpop.f32.mrf.mxu0
        %v595 = vadd.f32 %v566, %v594
        %v596 = vpop.f32.mrf.mxu0
        %v597 = vadd.f32 %v568, %v596
        %598 = vmatmul.bf16.gmra.mxu0 %v337
        %v599 = vpop.f32.mrf.mxu0
        %v600 = vadd.f32 %v571, %v599
        %v601 = vpop.f32.mrf.mxu0
        %v602 = vadd.f32 %v573, %v601
        %603 = vmatmul.bf16.gmra.mxu0 %v341
        %v604 = vpop.f32.mrf.mxu0
        %v605 = vadd.f32 %v576, %v604
        %v606 = vpop.f32.mrf.mxu0
        %v607 = vadd.f32 %v578, %v606
        %608 = vmatmul.bf16.gmra.mxu0 %v345
        %v609 = vpop.f32.mrf.mxu0
        %v610 = vadd.f32 %v581, %v609
        %v611 = vpop.f32.mrf.mxu0
        %v612 = vadd.f32 %v583, %v611
        %613 = vdwg.mxu0
        %614 = vmatpush.bf16.msra.mxu0 %v515
        %615 = vmatpush.bf16.msra.mxu0 %v514
        %616 = vmatpush.bf16.msra.mxu0 %v513
        %617 = vmatpush.bf16.msra.mxu0 %v512
        %618 = vmatpush.bf16.msra.mxu0 %v511
        %619 = vmatpush.bf16.msra.mxu0 %v510
        %620 = vmatpush.bf16.msra.mxu0 %v509
        %621 = vmatpush.bf16.msra.mxu0 %v508
        %622 = vmatmul.bf16.gmra.mxu0 %v334
        %v623 = vpop.f32.mrf.mxu0
        %v624 = vadd.f32 %v595, %v623
        %v625 = vpop.f32.mrf.mxu0
        %v626 = vadd.f32 %v597, %v625
        %627 = vmatmul.bf16.gmra.mxu0 %v338
        %v628 = vpop.f32.mrf.mxu0
        %v629 = vadd.f32 %v600, %v628
        %v630 = vpop.f32.mrf.mxu0
        %v631 = vadd.f32 %v602, %v630
        %632 = vmatmul.bf16.gmra.mxu0 %v342
        %v633 = vpop.f32.mrf.mxu0
        %v634 = vadd.f32 %v605, %v633
        %v635 = vpop.f32.mrf.mxu0
        %v636 = vadd.f32 %v607, %v635
        %637 = vmatmul.bf16.gmra.mxu0 %v346
        %v638 = vpop.f32.mrf.mxu0
        %v639 = vadd.f32 %v610, %v638
        %v640 = vpop.f32.mrf.mxu0
        %v641 = vadd.f32 %v612, %v640
        %642 = vdwg.mxu0
        %643 = vmatpush.bf16.msra.mxu0 %v523
        %644 = vmatpush.bf16.msra.mxu0 %v522
        %645 = vmatpush.bf16.msra.mxu0 %v521
        %646 = vmatpush.bf16.msra.mxu0 %v520
        %647 = vmatpush.bf16.msra.mxu0 %v519
        %648 = vmatpush.bf16.msra.mxu0 %v518
        %649 = vmatpush.bf16.msra.mxu0 %v517
        %650 = vmatpush.bf16.msra.mxu0 %v516
        %651 = vmatmul.bf16.gmra.mxu0 %v335
        %v652 = vpop.f32.mrf.mxu0
        %v653 = vadd.f32 %v624, %v652
        %v654 = vpop.f32.mrf.mxu0
        %v655 = vadd.f32 %v626, %v654
        %656 = vmatmul.bf16.gmra.mxu0 %v339
        %v657 = vpop.f32.mrf.mxu0
        %v658 = vadd.f32 %v629, %v657
        %v659 = vpop.f32.mrf.mxu0
        %v660 = vadd.f32 %v631, %v659
        %661 = vmatmul.bf16.gmra.mxu0 %v343
        %v662 = vpop.f32.mrf.mxu0
        %v663 = vadd.f32 %v634, %v662
        %v664 = vpop.f32.mrf.mxu0
        %v665 = vadd.f32 %v636, %v664
        %666 = vmatmul.bf16.gmra.mxu0 %v347
        %v667 = vpop.f32.mrf.mxu0
        %v668 = vadd.f32 %v639, %v667
        %v669 = vpop.f32.mrf.mxu0
        %v670 = vadd.f32 %v641, %v669
        %671 = vdwg.mxu0
        %v672 = vmax.f32 %v653, 0.0
        %v673 = vmax.f32 %v655, 0.0
        %v674 = vmax.f32 %v658, 0.0
        %v675 = vmax.f32 %v660, 0.0
        %v676 = vmax.f32 %v663, 0.0
        %v677 = vmax.f32 %v665, 0.0
        %v678 = vmax.f32 %v668, 0.0
        %v679 = vmax.f32 %v670, 0.0
        %v680 = vpack.c.bf16 %v672, %v672
        %v681 = vpack.c.bf16 %v673, %v673
        %v682 = vpack.c.bf16 %v674, %v674
        %v683 = vpack.c.bf16 %v675, %v675
        %v684 = vpack.c.bf16 %v676, %v676
        %v685 = vpack.c.bf16 %v677, %v677
        %v686 = vpack.c.bf16 %v678, %v678
        %v687 = vpack.c.bf16 %v679, %v679
        %vm688 = vcmask 519168
        %689 = vst.msk [vmem:[%s177] sm:$0xf] %vm688, %v680
        %690 = vst.msk [vmem:[%s177 + $0x4] sm:$0xf] %vm688, %v681
        %691 = vst.msk [vmem:[%s177 + $0x8] sm:$0xf] %vm688, %v682
        %692 = vst.msk [vmem:[%s177 + $0xc] sm:$0xf] %vm688, %v683
        %693 = vst.msk [vmem:[%s177 + $0x10] sm:$0xf] %vm688, %v684
        %694 = vst.msk [vmem:[%s177 + $0x14] sm:$0xf] %vm688, %v685
        %695 = vst.msk [vmem:[%s177 + $0x18] sm:$0xf] %vm688, %v686
        %696 = vst.msk [vmem:[%s177 + $0x1c] sm:$0xf] %vm688, %v687
        %s697 = sand.u32 %s90, 1
        %s698 = sand.u32 %s90, 1
        %s699 = smul.addr %s698, 32
        %s700 = scalar_lea.vmem [#allocation2], %s699
        // Predicated region
        $region33: #{encoder_forward.4} parent=31 // pred_check
          %p701 = pneg %p100
        $region34: #{encoder_forward.4} parent=31 // pred_check_branch
          %703 = sbr.rel (%p701) target = $region36
        $region35: #{encoder_forward.4} parent=31 // pred_region
          %s704 = smul.u32 8, %s14
          %s705 = ssub.s32 31, %s704
          %p706 = scmp.lt.s32.totalorder %s705, 8
          %s707 = scalar_select %p706, %s705, 8
          %s708 = smul.u32 4, %s707
          %p709 = scmp.ne.s32.totalorder 0, %s708
          %s710 = smul.addr %s704, 4
          %s711 = scalar_lea.vmem %s3, %s710
          // Predicated region
          $region37: #{encoder_forward.4} parent=35 // pred_check
            %p712 = pneg %p709
          $region38: #{encoder_forward.4} parent=35 // pred_check_branch
            %714 = sbr.rel (%p712) target = $region40
          $region39: #{encoder_forward.4} parent=35 // pred_region
            // Predicated region
            $region41: #{encoder_forward.4} parent=39 // pred_check
              _
            $region42: #{encoder_forward.4} parent=39 // pred_check_branch
              %716 = sbr.rel target = $region44
            $region43: #{encoder_forward.4} parent=39 // pred_region
              // Predicated region
              $region63: #{encoder_forward.4} parent=43 // pred_check
                _
              $region64: #{encoder_forward.4} parent=43 // pred_check_branch
                %780 = sbr.rel (0) target = $region66
              $region65: #{encoder_forward.4} parent=43 // pred_region
                %s782 = ssub.s32 16, 1
                %s783 = sshrl.u32 %s707, 3
                // While loop
                $region67: #{encoder_forward.4} parent=65 // loop_pre_header
                  _
                $region68: #{encoder_forward.4} parent=65 // loop_header
                  %s785 = sphi 0, %s787
                  %p786 = scmp.ge.s32.totalorder %s785, %s783
                  %s790 = sphi 0, %s811
                  %s791 = sphi %s700, %s814
                  %s792 = sphi %s711, %s815
                $region69: #{encoder_forward.4} parent=65 // loop_header_branch
                  %789 = sbr.rel (%p786) target = $region73
                $region70: #{encoder_forward.4} parent=65 // loop_body
                  %v793 = vld [vmem:[%s791] sm:%s782]
                  %794 = vst [vmem:[%s792] sm:%s782] %v793
                  %v795 = vld [vmem:[%s791 + $0x4] sm:%s782]
                  %796 = vst [vmem:[%s792 + $0x4] sm:%s782] %v795
                  %v797 = vld [vmem:[%s791 + $0x8] sm:%s782]
                  %798 = vst [vmem:[%s792 + $0x8] sm:%s782] %v797
                  %v799 = vld [vmem:[%s791 + $0xc] sm:%s782]
                  %800 = vst [vmem:[%s792 + $0xc] sm:%s782] %v799
                  %v801 = vld [vmem:[%s791 + $0x10] sm:%s782]
                  %802 = vst [vmem:[%s792 + $0x10] sm:%s782] %v801
                  %v803 = vld [vmem:[%s791 + $0x14] sm:%s782]
                  %804 = vst [vmem:[%s792 + $0x14] sm:%s782] %v803
                  %v805 = vld [vmem:[%s791 + $0x18] sm:%s782]
                  %806 = vst [vmem:[%s792 + $0x18] sm:%s782] %v805
                  %v807 = vld [vmem:[%s791 + $0x1c] sm:%s782]
                  %808 = vst [vmem:[%s792 + $0x1c] sm:%s782] %v807
                  %s809 = sadd.s32 1, %s790
                  %p810 = scmp.ge.s32.totalorder %s809, %s783
                  %s811 = scalar_select %p810, 0, %s809
                  %s812 = smul.u32 %s811, 32
                  %s813 = smul.u32 %s811, 32
                  %s814 = scalar_lea.vmem %s700, %s812 [#allocation2]
                  %s815 = scalar_lea.vmem %s711, %s813
                $region71: #{encoder_forward.4} parent=65 // loop_footer
                  %s787 = sadd.s32 %s785, 1
                $region72: #{encoder_forward.4} parent=65 // loop_footer_branch
                  %784 = sbr.rel target = $region68
                $region73: #{encoder_forward.4} parent=65 // loop_exit
                  _
                %s816 = sshrl.u32 %s707, 3
                %s817 = sand.u32 %s707, 7
                %s818 = smul.u32 %s816, 8
                %s819 = smul.u32 4, %s818
                %s820 = scalar_lea.vmem %s700, %s819 [#allocation2]
                %s821 = smul.u32 4, %s818
                %s822 = scalar_lea.vmem %s711, %s821
                // While loop
                $region74: #{encoder_forward.4} parent=65 // loop_pre_header
                  _
                $region75: #{encoder_forward.4} parent=65 // loop_header
                  %s824 = sphi 0, %s826
                  %p825 = scmp.ge.s32.totalorder %s824, %s817
                  %s829 = sphi 0, %s836
                  %s830 = sphi %s820, %s839
                  %s831 = sphi %s822, %s840
                $region76: #{encoder_forward.4} parent=65 // loop_header_branch
                  %828 = sbr.rel (%p825) target = $region80
                $region77: #{encoder_forward.4} parent=65 // loop_body
                  %v832 = vld [vmem:[%s830] sm:%s782]
                  %833 = vst [vmem:[%s831] sm:%s782] %v832
                  %s834 = sadd.s32 1, %s829
                  %p835 = scmp.ge.s32.totalorder %s834, %s817
                  %s836 = scalar_select %p835, 0, %s834
                  %s837 = smul.u32 %s836, 4
                  %s838 = smul.u32 %s836, 4
                  %s839 = scalar_lea.vmem %s820, %s837 [#allocation2]
                  %s840 = scalar_lea.vmem %s822, %s838
                $region78: #{encoder_forward.4} parent=65 // loop_footer
                  %s826 = sadd.s32 %s824, 1
                $region79: #{encoder_forward.4} parent=65 // loop_footer_branch
                  %823 = sbr.rel target = $region75
                $region80: #{encoder_forward.4} parent=65 // loop_exit
                  _
              $region66: #{encoder_forward.4} parent=43 // pred_fallthru
                _
            $region44: #{encoder_forward.4} parent=39 // pred_fallthru
              _
            // Predicated region
            $region45: #{encoder_forward.4} parent=39 // pred_check
              _
            $region46: #{encoder_forward.4} parent=39 // pred_check_branch
              %718 = sbr.rel (0) target = $region48
            $region47: #{encoder_forward.4} parent=39 // pred_region
              %s720 = ssub.s32 16, 1
              %s721 = sshrl.u32 %s707, 3
              // While loop
              $region49: #{encoder_forward.4} parent=47 // loop_pre_header
                _
              $region50: #{encoder_forward.4} parent=47 // loop_header
                %s723 = sphi 0, %s725
                %p724 = scmp.ge.s32.totalorder %s723, %s721
                %s728 = sphi 0, %s749
                %s729 = sphi %s700, %s752
                %s730 = sphi %s711, %s753
              $region51: #{encoder_forward.4} parent=47 // loop_header_branch
                %727 = sbr.rel (%p724) target = $region55
              $region52: #{encoder_forward.4} parent=47 // loop_body
                %v731 = vld [vmem:[%s729] sm:%s720]
                %732 = vst [vmem:[%s730] sm:%s720] %v731
                %v733 = vld [vmem:[%s729 + $0x4] sm:%s720]
                %734 = vst [vmem:[%s730 + $0x4] sm:%s720] %v733
                %v735 = vld [vmem:[%s729 + $0x8] sm:%s720]
                %736 = vst [vmem:[%s730 + $0x8] sm:%s720] %v735
                %v737 = vld [vmem:[%s729 + $0xc] sm:%s720]
                %738 = vst [vmem:[%s730 + $0xc] sm:%s720] %v737
                %v739 = vld [vmem:[%s729 + $0x10] sm:%s720]
                %740 = vst [vmem:[%s730 + $0x10] sm:%s720] %v739
                %v741 = vld [vmem:[%s729 + $0x14] sm:%s720]
                %742 = vst [vmem:[%s730 + $0x14] sm:%s720] %v741
                %v743 = vld [vmem:[%s729 + $0x18] sm:%s720]
                %744 = vst [vmem:[%s730 + $0x18] sm:%s720] %v743
                %v745 = vld [vmem:[%s729 + $0x1c] sm:%s720]
                %746 = vst [vmem:[%s730 + $0x1c] sm:%s720] %v745
                %s747 = sadd.s32 1, %s728
                %p748 = scmp.ge.s32.totalorder %s747, %s721
                %s749 = scalar_select %p748, 0, %s747
                %s750 = smul.u32 %s749, 32
                %s751 = smul.u32 %s749, 32
                %s752 = scalar_lea.vmem %s700, %s750 [#allocation2]
                %s753 = scalar_lea.vmem %s711, %s751
              $region53: #{encoder_forward.4} parent=47 // loop_footer
                %s725 = sadd.s32 %s723, 1
              $region54: #{encoder_forward.4} parent=47 // loop_footer_branch
                %722 = sbr.rel target = $region50
              $region55: #{encoder_forward.4} parent=47 // loop_exit
                _
              %s754 = sshrl.u32 %s707, 3
              %s755 = sand.u32 %s707, 7
              %s756 = smul.u32 %s754, 8
              %s757 = smul.u32 4, %s756
              %s758 = scalar_lea.vmem %s700, %s757 [#allocation2]
              %s759 = smul.u32 4, %s756
              %s760 = scalar_lea.vmem %s711, %s759
              // While loop
              $region56: #{encoder_forward.4} parent=47 // loop_pre_header
                _
              $region57: #{encoder_forward.4} parent=47 // loop_header
                %s762 = sphi 0, %s764
                %p763 = scmp.ge.s32.totalorder %s762, %s755
                %s767 = sphi 0, %s774
                %s768 = sphi %s758, %s777
                %s769 = sphi %s760, %s778
              $region58: #{encoder_forward.4} parent=47 // loop_header_branch
                %766 = sbr.rel (%p763) target = $region62
              $region59: #{encoder_forward.4} parent=47 // loop_body
                %v770 = vld [vmem:[%s768] sm:%s720]
                %771 = vst [vmem:[%s769] sm:%s720] %v770
                %s772 = sadd.s32 1, %s767
                %p773 = scmp.ge.s32.totalorder %s772, %s755
                %s774 = scalar_select %p773, 0, %s772
                %s775 = smul.u32 %s774, 4
                %s776 = smul.u32 %s774, 4
                %s777 = scalar_lea.vmem %s758, %s775 [#allocation2]
                %s778 = scalar_lea.vmem %s760, %s776
              $region60: #{encoder_forward.4} parent=47 // loop_footer
                %s764 = sadd.s32 %s762, 1
              $region61: #{encoder_forward.4} parent=47 // loop_footer_branch
                %761 = sbr.rel target = $region57
              $region62: #{encoder_forward.4} parent=47 // loop_exit
                _
            $region48: #{encoder_forward.4} parent=39 // pred_fallthru
              _
          $region40: #{encoder_forward.4} parent=35 // pred_fallthru
            _
          %841 = vnop
        $region36: #{encoder_forward.4} parent=31 // pred_fallthru
          _
      $region32: #{encoder_forward.4} parent=5 // pred_fallthru
        _
      %p842 = scmp.le.s32.totalorder 2, %s9
      // Predicated region
      $region81: #{encoder_forward.4} parent=5 // pred_check
        %p843 = pneg %p842
      $region82: #{encoder_forward.4} parent=5 // pred_check_branch
        %845 = sbr.rel (%p843) target = $region84
      $region83: #{encoder_forward.4} parent=5 // pred_region
        %s846 = ssub.s32 %s9, 2
        // Predicated region
        $region85: #{encoder_forward.4} parent=83 // pred_check
          %p847 = pneg %p106
        $region86: #{encoder_forward.4} parent=83 // pred_check_branch
          %849 = sbr.rel (%p847) target = $region88
        $region87: #{encoder_forward.4} parent=83 // pred_region
          %s850 = sand.u32 %s91, 1
          %s851 = sand.u32 %s91, 1
          %s852 = smul.addr %s851, 32
          %s853 = scalar_lea.vmem [#allocation2], %s852
        $region88: #{encoder_forward.4} parent=83 // pred_fallthru
          _
      $region84: #{encoder_forward.4} parent=5 // pred_fallthru
        _
    $region6: #{encoder_forward.4} parent=1 // loop_footer
      %s13 = sadd.s32 1, %s9
    $region7: #{encoder_forward.4} parent=1 // loop_footer_branch
      %8 = sbr.rel target = $region3
    $region8: #{encoder_forward.4} parent=1 // loop_exit
      _

// kernel: encoder_forward.5
$region0: #{encoder_forward.5}
  #allocation0 [shape = 'u32[]', space=smem, size = 0x4, offset = 0x4, fixed_abs, tag = 'smem constant byte address 0x4 - core index']
  #allocation1 [shape = 'u32[72,128]{1,0:T(1,128)}', space=vmem, size = 0x9000, scoped, tag = 'internal scratch']
  %s0 = inlined_call_operand.vmem [shape: bf16[242,576], index: 0, kind: input, shape index: {}]
  %s1 = inlined_call_operand.vmem [shape: bf16[576,64], index: 1, kind: input, shape index: {}]
  %s2 = inlined_call_operand.vmem [shape: f32[1,64], index: 2, kind: input, shape index: {}]
  %s3 = inlined_call_operand.vmem [shape: f32[242,64], index: 3, kind: output, shape index: {}]
  %s4 = sld [smem:[#allocation0]]
  $region93: #{encoder_forward.5} parent=0
    _
  %s6 = ssub.s32 1, %s4
  %s7 = scalar_select 0, %s6, %s4
  $region1: #{encoder_forward.5} parent=0
    #allocation2 [shape = 'u8[65536]{0}', space=vmem, size = 0x10000, scoped, tag = 'output window, operand 0']
    loop: start=0, step=1, limit=6
    $region2: #{encoder_forward.5} parent=1 // loop_pre_header
      _
    $region3: #{encoder_forward.5} parent=1 // loop_header
      %s9 = sphi 0, %s13
      %p10 = scmp.ge.s32.totalorder %s9, 6
      %s19 = sphi 0, %s21
      %s22 = sphi 0, %s19
      %s23 = sphi 0, %s22
      %s39 = sphi 0, %s23
      %s43 = sphi 0, %s43
      %s45 = sphi 0, %s43
      %s46 = sphi 0, %s45
      %s60 = sphi 0, %s46
      %s64 = sphi 0, %s64
      %s66 = sphi 0, %s64
      %s67 = sphi 0, %s66
      %s81 = sphi 0, %s67
      %s87 = sphi 0, %s89
      %s90 = sphi 0, %s87
      %s91 = sphi 0, %s90
      %s107 = sphi 0, %s91
    $region4: #{encoder_forward.5} parent=1 // loop_header_branch
      %12 = sbr.rel (%p10) target = $region8
    $region5: #{encoder_forward.5} parent=1 // loop_body
      %s14 = ssub.s32 %s9, 1
      %s15 = ssub.s32 %s9, 2
      %s16 = sadd.s32 %s9, 1
      %s17 = ssub.s32 %s9, %s16
      %p18 = scmp.eq.s32.totalorder %s17, 0
      %s20 = sadd.s32 %s19, 1
      %s21 = scalar_select %p18, %s19, %s20
      %p24 = pneg %p18
      %p25 = scmp.eq.s32.totalorder %s9, 3
      %p26 = por %p24, %p25
      %p27 = scmp.ne.s32.totalorder %s19, %s22
      %p28 = scmp.eq.s32.totalorder %s9, 0
      %p29 = por %p27, %p28
      %p30 = scmp.ne.s32.totalorder %s19, %s22
      %p31 = scmp.eq.s32.totalorder %s14, 3
      %p32 = por %p30, %p31
      %p33 = scmp.ne.s32.totalorder %s22, %s23
      %p34 = scmp.eq.s32.totalorder %s14, 0
      %p35 = por %p33, %p34
      %p36 = scmp.ne.s32.totalorder %s22, %s23
      %p37 = scmp.eq.s32.totalorder %s15, 3
      %p38 = por %p36, %p37
      %p40 = scmp.ne.s32.totalorder %s23, %s39
      %p41 = scmp.eq.s32.totalorder %s15, 0
      %p42 = por %p40, %p41
      %s44 = sadd.s32 %s43, 1
      %p47 = scmp.eq.s32.totalorder %s9, 3
      %p48 = scmp.ne.s32.totalorder %s43, %s45
      %p49 = scmp.eq.s32.totalorder %s9, 0
      %p50 = por %p48, %p49
      %p51 = scmp.ne.s32.totalorder %s43, %s45
      %p52 = scmp.eq.s32.totalorder %s14, 3
      %p53 = por %p51, %p52
      %p54 = scmp.ne.s32.totalorder %s45, %s46
      %p55 = scmp.eq.s32.totalorder %s14, 0
      %p56 = por %p54, %p55
      %p57 = scmp.ne.s32.totalorder %s45, %s46
      %p58 = scmp.eq.s32.totalorder %s15, 3
      %p59 = por %p57, %p58
      %p61 = scmp.ne.s32.totalorder %s46, %s60
      %p62 = scmp.eq.s32.totalorder %s15, 0
      %p63 = por %p61, %p62
      %s65 = sadd.s32 %s64, 1
      %p68 = scmp.eq.s32.totalorder %s9, 3
      %p69 = scmp.ne.s32.totalorder %s64, %s66
      %p70 = scmp.eq.s32.totalorder %s9, 0
      %p71 = por %p69, %p70
      %p72 = scmp.ne.s32.totalorder %s64, %s66
      %p73 = scmp.eq.s32.totalorder %s14, 3
      %p74 = por %p72, %p73
      %p75 = scmp.ne.s32.totalorder %s66, %s67
      %p76 = scmp.eq.s32.totalorder %s14, 0
      %p77 = por %p75, %p76
      %p78 = scmp.ne.s32.totalorder %s66, %s67
      %p79 = scmp.eq.s32.totalorder %s15, 3
      %p80 = por %p78, %p79
      %p82 = scmp.ne.s32.totalorder %s67, %s81
      %p83 = scmp.eq.s32.totalorder %s15, 0
      %p84 = por %p82, %p83
      %s85 = ssub.s32 %s9, %s16
      %p86 = scmp.eq.s32.totalorder %s85, 0
      %s88 = sadd.s32 %s87, 1
      %s89 = scalar_select %p86, %s87, %s88
      %p92 = pneg %p86
      %p93 = scmp.eq.s32.totalorder %s9, 3
      %p94 = por %p92, %p93
      %p95 = scmp.ne.s32.totalorder %s87, %s90
      %p96 = scmp.eq.s32.totalorder %s9, 0
      %p97 = por %p95, %p96
      %p98 = scmp.ne.s32.totalorder %s87, %s90
      %p99 = scmp.eq.s32.totalorder %s14, 3
      %p100 = por %p98, %p99
      %p101 = scmp.ne.s32.totalorder %s90, %s91
      %p102 = scmp.eq.s32.totalorder %s14, 0
      %p103 = por %p101, %p102
      %p104 = scmp.ne.s32.totalorder %s90, %s91
      %p105 = scmp.eq.s32.totalorder %s15, 3
      %p106 = por %p104, %p105
      %p108 = scmp.ne.s32.totalorder %s91, %s107
      %p109 = scmp.eq.s32.totalorder %s15, 0
      %p110 = por %p108, %p109
      %p111 = scmp.le.s32.totalorder 1, %s9
      %p112 = scmp.lt.s32.totalorder %s9, 5
      %p113 = pnand %p111, %p112
      %p114 = pneg %p113
      // Predicated region
      $region9: #{encoder_forward.5} parent=5 // pred_check
        _
      $region10: #{encoder_forward.5} parent=5 // pred_check_branch
        %116 = sbr.rel (%p113) target = $region12
      $region11: #{encoder_forward.5} parent=5 // pred_region
        %s117 = ssub.s32 %s9, 1
        // Predicated region
        $region13: #{encoder_forward.5} parent=11 // pred_check
          %p118 = pneg %p56
        $region14: #{encoder_forward.5} parent=11 // pred_check_branch
          %120 = sbr.rel (%p118) target = $region16
        $region15: #{encoder_forward.5} parent=11 // pred_region
          _
        $region16: #{encoder_forward.5} parent=11 // pred_fallthru
          _
        // Predicated region
        $region17: #{encoder_forward.5} parent=11 // pred_check
          %p121 = pneg %p77
        $region18: #{encoder_forward.5} parent=11 // pred_check_branch
          %123 = sbr.rel (%p121) target = $region20
        $region19: #{encoder_forward.5} parent=11 // pred_region
          _
        $region20: #{encoder_forward.5} parent=11 // pred_fallthru
          _
      $region12: #{encoder_forward.5} parent=5 // pred_fallthru
        _
      %p124 = scmp.lt.s32.totalorder %s9, 4
      // Predicated region
      $region21: #{encoder_forward.5} parent=5 // pred_check
        %p125 = pneg %p124
      $region22: #{encoder_forward.5} parent=5 // pred_check_branch
        %127 = sbr.rel (%p125) target = $region24
      $region23: #{encoder_forward.5} parent=5 // pred_region
        // Predicated region
        $region25: #{encoder_forward.5} parent=23 // pred_check
          %p128 = pneg %p29
        $region26: #{encoder_forward.5} parent=23 // pred_check_branch
          %130 = sbr.rel (%p128) target = $region28
        $region27: #{encoder_forward.5} parent=23 // pred_region
          %s131 = smul.u32 8, %s9
          %s132 = ssub.s32 31, %s131
          %p133 = scmp.lt.s32.totalorder %s132, 8
          %s134 = scalar_select %p133, %s132, 8
          %s135 = smul.u32 4, %s134
          %s136 = smul.u32 %s135, 5
          %p137 = scmp.lt.s32.totalorder %s131, 30
          %s138 = scalar_select %p137, %s131, 30
          %s139 = smul.addr %s138, 5
          %s140 = smul.addr %s139, 4
          %s141 = scalar_lea.vmem %s0, %s140
          %s142 = smul.u32 8, %s9
          %s143 = ssub.s32 31, %s142
          %p144 = scmp.lt.s32.totalorder %s143, 8
          %s145 = scalar_select %p144, %s143, 8
          %s146 = smul.u32 4, %s145
          %s147 = smul.u32 %s146, 5
        $region28: #{encoder_forward.5} parent=23 // pred_fallthru
          _
      $region24: #{encoder_forward.5} parent=5 // pred_fallthru
        _
      %p148 = scmp.le.s32.totalorder 1, %s9
      %p149 = scmp.lt.s32.totalorder %s9, 5
      %p150 = pnand %p148, %p149
      %p151 = pneg %p150
      // Predicated region
      $region29: #{encoder_forward.5} parent=5 // pred_check
        _
      $region30: #{encoder_forward.5} parent=5 // pred_check_branch
        %153 = sbr.rel (%p150) target = $region32
      $region31: #{encoder_forward.5} parent=5 // pred_region
        %s154 = ssub.s32 %s9, 1
        %s155 = smul.u32 8, %s14
        %s156 = ssub.s32 31, %s155
        %p157 = scmp.lt.s32.totalorder %s156, 8
        %s158 = scalar_select %p157, %s156, 8
        %s159 = smul.u32 4, %s158
        %s160 = smul.u32 %s159, 5
        %p161 = scmp.lt.s32.totalorder %s155, 30
        %s162 = scalar_select %p161, %s155, 30
        %s163 = smul.addr %s162, 5
        %s164 = smul.addr %s163, 4
        %s165 = scalar_lea.vmem %s0, %s164
        %p166 = pneg %p35
        %p167 = pneg %p32
        %p168 = pneg %p56
        %p169 = pneg %p53
        %p170 = pneg %p77
        %p171 = pneg %p74
        %p172 = pneg %p103
        %p173 = pneg %p100
        %s174 = sand.u32 %s90, 1
        %s175 = sand.u32 %s90, 1
        %s176 = smul.addr %s175, 64
        %s177 = scalar_lea.vmem [#allocation2], %s176
        %s178 = smul.u32 8, %s14
        %s179 = ssub.s32 31, %s178
        %p180 = scmp.lt.s32.totalorder %s179, 8
        %s181 = scalar_select %p180, %s179, 8
        %s182 = smul.u32 4, %s181
        %s183 = smul.u32 %s182, 5
        %p184 = scmp.lt.s32.totalorder %s178, 30
        %s185 = scalar_select %p184, %s178, 30
        %s186 = smul.addr %s185, 5
        %s187 = smul.addr %s186, 4
        %s188 = scalar_lea.vmem %s0, %s187
        %s189 = smul.u32 8, %s14
        %s190 = ssub.s32 31, %s189
        %p191 = scmp.lt.s32.totalorder %s190, 8
        %s192 = scalar_select %p191, %s190, 8
        %s193 = smul.u32 4, %s192
        %s194 = smul.u32 %s193, 5
        %s195 = smul.u32 8, %s14
        %s196 = ssub.s32 31, %s195
        %p197 = scmp.lt.s32.totalorder %s196, 8
        %s198 = scalar_select %p197, %s196, 8
        %s199 = smul.u32 8, %s198
        %v201 = vld [vmem:[%s188] sm:$0xff]
        %v202 = vld [vmem:[%s188 + $0x8] sm:$0xff]
        %v203 = vld [vmem:[%s188 + $0x10] sm:$0xf]
        %v204 = vld [vmem:[%s188 + $0x14] sm:$0xff]
        %v205 = vld [vmem:[%s188 + $0x1c] sm:$0xff]
        %v206 = vld [vmem:[%s188 + $0x24] sm:$0xf]
        %v207 = vld [vmem:[%s188 + $0x28] sm:$0xff]
        %v208 = vld [vmem:[%s188 + $0x30] sm:$0xff]
        %v209 = vld [vmem:[%s188 + $0x38] sm:$0xf]
        %v210 = vld [vmem:[%s188 + $0x3c] sm:$0xff]
        %v211 = vld [vmem:[%s188 + $0x44] sm:$0xff]
        %v212 = vld [vmem:[%s188 + $0x4c] sm:$0xf]
        %v213 = vld [vmem:[%s188 + $0x50] sm:$0xff]
        %v214 = vld [vmem:[%s188 + $0x58] sm:$0xff]
        %v215 = vld [vmem:[%s188 + $0x60] sm:$0xf]
        %v216 = vld [vmem:[%s188 + $0x64] sm:$0xff]
        %v217 = vld [vmem:[%s188 + $0x6c] sm:$0xff]
        %v218 = vld [vmem:[%s188 + $0x74] sm:$0xf]
        %v219 = vld [vmem:[%s188 + $0x78] sm:$0xff]
        %v220 = vld [vmem:[%s188 + $0x80] sm:$0xff]
        %v221 = vld [vmem:[%s188 + $0x88] sm:$0xf]
        %v222 = vld [vmem:[%s188 + $0x8c] sm:$0xff]
        %v223 = vld [vmem:[%s188 + $0x94] sm:$0xff]
        %v224 = vld [vmem:[%s188 + $0x9c] sm:$0xf]
        %v225 = vld [vmem:[%s1] sm:$0xf]
        %v226 = vld [vmem:[%s1 + $0x4] sm:$0xf]
        %v227 = vld [vmem:[%s1 + $0x8] sm:$0xf]
        %v228 = vld [vmem:[%s1 + $0xc] sm:$0xf]
        %v229 = vld [vmem:[%s1 + $0x10] sm:$0xf]
        %v230 = vld [vmem:[%s1 + $0x14] sm:$0xf]
        %v231 = vld [vmem:[%s1 + $0x18] sm:$0xf]
        %v232 = vld [vmem:[%s1 + $0x1c] sm:$0xf]
        %v233 = vld [vmem:[%s1 + $0x20] sm:$0xf]
        %v234 = vld [vmem:[%s1 + $0x24] sm:$0xf]
        %v235 = vld [vmem:[%s1 + $0x28] sm:$0xf]
        %v236 = vld [vmem:[%s1 + $0x2c] sm:$0xf]
        %v237 = vld [vmem:[%s1 + $0x30] sm:$0xf]
        %v238 = vld [vmem:[%s1 + $0x34] sm:$0xf]
        %v239 = vld [vmem:[%s1 + $0x38] sm:$0xf]
        %v240 = vld [vmem:[%s1 + $0x3c] sm:$0xf]
        %v241 = vld [vmem:[%s1 + $0x40] sm:$0xf]
        %v242 = vld [vmem:[%s1 + $0x44] sm:$0xf]
        %v243 = vld [vmem:[%s1 + $0x48] sm:$0xf]
        %v244 = vld [vmem:[%s1 + $0x4c] sm:$0xf]
        %v245 = vld [vmem:[%s1 + $0x50] sm:$0xf]
        %v246 = vld [vmem:[%s1 + $0x54] sm:$0xf]
        %v247 = vld [vmem:[%s1 + $0x58] sm:$0xf]
        %v248 = vld [vmem:[%s1 + $0x5c] sm:$0xf]
        %v249 = vld [vmem:[%s1 + $0x60] sm:$0xf]
        %v250 = vld [vmem:[%s1 + $0x64] sm:$0xf]
        %v251 = vld [vmem:[%s1 + $0x68] sm:$0xf]
        %v252 = vld [vmem:[%s1 + $0x6c] sm:$0xf]
        %v253 = vld [vmem:[%s1 + $0x70] sm:$0xf]
        %v254 = vld [vmem:[%s1 + $0x74] sm:$0xf]
        %v255 = vld [vmem:[%s1 + $0x78] sm:$0xf]
        %v256 = vld [vmem:[%s1 + $0x7c] sm:$0xf]
        %v257 = vld [vmem:[%s1 + $0x80] sm:$0xf]
        %v258 = vld [vmem:[%s1 + $0x84] sm:$0xf]
        %v259 = vld [vmem:[%s1 + $0x88] sm:$0xf]
        %v260 = vld [vmem:[%s1 + $0x8c] sm:$0xf]
        %v261 = vld [vmem:[%s1 + $0x90] sm:$0xf]
        %v262 = vld [vmem:[%s1 + $0x94] sm:$0xf]
        %v263 = vld [vmem:[%s1 + $0x98] sm:$0xf]
        %v264 = vld [vmem:[%s1 + $0x9c] sm:$0xf]
        %v265 = vld [vmem:[%s1 + $0xa0] sm:$0xf]
        %v266 = vld [vmem:[%s1 + $0xa4] sm:$0xf]
        %v267 = vld [vmem:[%s1 + $0xa8] sm:$0xf]
        %v268 = vld [vmem:[%s1 + $0xac] sm:$0xf]
        %v269 = vld [vmem:[%s1 + $0xb0] sm:$0xf]
        %v270 = vld [vmem:[%s1 + $0xb4] sm:$0xf]
        %v271 = vld [vmem:[%s1 + $0xb8] sm:$0xf]
        %v272 = vld [vmem:[%s1 + $0xbc] sm:$0xf]
        %v273 = vld [vmem:[%s1 + $0xc0] sm:$0xf]
        %v274 = vld [vmem:[%s1 + $0xc4] sm:$0xf]
        %v275 = vld [vmem:[%s1 + $0xc8] sm:$0xf]
        %v276 = vld [vmem:[%s1 + $0xcc] sm:$0xf]
        %v277 = vld [vmem:[%s1 + $0xd0] sm:$0xf]
        %v278 = vld [vmem:[%s1 + $0xd4] sm:$0xf]
        %v279 = vld [vmem:[%s1 + $0xd8] sm:$0xf]
        %v280 = vld [vmem:[%s1 + $0xdc] sm:$0xf]
        %v281 = vld [vmem:[%s1 + $0xe0] sm:$0xf]
        %v282 = vld [vmem:[%s1 + $0xe4] sm:$0xf]
        %v283 = vld [vmem:[%s1 + $0xe8] sm:$0xf]
        %v284 = vld [vmem:[%s1 + $0xec] sm:$0xf]
        %v285 = vld [vmem:[%s1 + $0xf0] sm:$0xf]
        %v286 = vld [vmem:[%s1 + $0xf4] sm:$0xf]
        %v287 = vld [vmem:[%s1 + $0xf8] sm:$0xf]
        %v288 = vld [vmem:[%s1 + $0xfc] sm:$0xf]
        %v289 = vld [vmem:[%s1 + $0x100] sm:$0xf]
        %v290 = vld [vmem:[%s1 + $0x104] sm:$0xf]
        %v291 = vld [vmem:[%s1 + $0x108] sm:$0xf]
        %v292 = vld [vmem:[%s1 + $0x10c] sm:$0xf]
        %v293 = vld [vmem:[%s1 + $0x110] sm:$0xf]
        %v294 = vld [vmem:[%s1 + $0x114] sm:$0xf]
        %v295 = vld [vmem:[%s1 + $0x118] sm:$0xf]
        %v296 = vld [vmem:[%s1 + $0x11c] sm:$0xf]
        %v297 = vld [vmem:[%s2] sm:$0x1]
        %v299 = vperm.slane %v297, 0
        %v325 = vunpack.c.l.b16 %v201
        %v326 = vunpack.c.h.b16 %v201
        %v327 = vunpack.c.l.b16 %v202
        %v328 = vunpack.c.h.b16 %v202
        %v329 = vunpack.c.l.b16 %v203
        %v330 = vunpack.c.l.b16 %v204
        %v331 = vunpack.c.h.b16 %v204
        %v332 = vunpack.c.l.b16 %v205
        %v333 = vunpack.c.h.b16 %v205
        %v334 = vunpack.c.l.b16 %v206
        %v335 = vunpack.c.l.b16 %v207
        %v336 = vunpack.c.h.b16 %v207
        %v337 = vunpack.c.l.b16 %v208
        %v338 = vunpack.c.h.b16 %v208
        %v339 = vunpack.c.l.b16 %v209
        %v340 = vunpack.c.l.b16 %v210
        %v341 = vunpack.c.h.b16 %v210
        %v342 = vunpack.c.l.b16 %v211
        %v343 = vunpack.c.h.b16 %v211
        %v344 = vunpack.c.l.b16 %v212
        %v345 = vunpack.c.l.b16 %v213
        %v346 = vunpack.c.h.b16 %v213
        %v347 = vunpack.c.l.b16 %v214
        %v348 = vunpack.c.h.b16 %v214
        %v349 = vunpack.c.l.b16 %v215
        %v350 = vunpack.c.l.b16 %v216
        %v351 = vunpack.c.h.b16 %v216
        %v352 = vunpack.c.l.b16 %v217
        %v353 = vunpack.c.h.b16 %v217
        %v354 = vunpack.c.l.b16 %v218
        %v355 = vunpack.c.l.b16 %v219
        %v356 = vunpack.c.h.b16 %v219
        %v357 = vunpack.c.l.b16 %v220
        %v358 = vunpack.c.h.b16 %v220
        %v359 = vunpack.c.l.b16 %v221
        %v360 = vunpack.c.l.b16 %v222
        %v361 = vunpack.c.h.b16 %v222
        %v362 = vunpack.c.l.b16 %v223
        %v363 = vunpack.c.h.b16 %v223
        %v364 = vunpack.c.l.b16 %v224
        %v365 = vpack.c.b16 %v330, %v325
        %v366 = vpack.c.b16 %v331, %v326
        %v367 = vpack.c.b16 %v332, %v327
        %v368 = vpack.c.b16 %v333, %v328
        %v369 = vpack.c.b16 %v334, %v329
        %v370 = vpack.c.b16 %v340, %v335
        %v371 = vpack.c.b16 %v341, %v336
        %v372 = vpack.c.b16 %v342, %v337
        %v373 = vpack.c.b16 %v343, %v338
        %v374 = vpack.c.b16 %v344, %v339
        %v375 = vpack.c.b16 %v350, %v345
        %v376 = vpack.c.b16 %v351, %v346
        %v377 = vpack.c.b16 %v352, %v347
        %v378 = vpack.c.b16 %v353, %v348
        %v379 = vpack.c.b16 %v354, %v349
        %v380 = vpack.c.b16 %v360, %v355
        %v381 = vpack.c.b16 %v361, %v356
        %v382 = vpack.c.b16 %v362, %v357
        %v383 = vpack.c.b16 %v363, %v358
        %v384 = vpack.c.b16 %v364, %v359
        %v473 = vunpack.c.l.b16 %v225
        %v474 = vunpack.c.l.b16 %v226
        %v475 = vunpack.c.l.b16 %v227
        %v476 = vunpack.c.l.b16 %v228
        %v477 = vunpack.c.l.b16 %v229
        %v478 = vunpack.c.l.b16 %v230
        %v479 = vunpack.c.l.b16 %v231
        %v480 = vunpack.c.l.b16 %v232
        %v481 = vunpack.c.l.b16 %v233
        %v482 = vunpack.c.l.b16 %v234
        %v483 = vunpack.c.l.b16 %v235
        %v484 = vunpack.c.l.b16 %v236
        %v485 = vunpack.c.l.b16 %v237
        %v486 = vunpack.c.l.b16 %v238
        %v487 = vunpack.c.l.b16 %v239
        %v488 = vunpack.c.l.b16 %v240
        %v489 = vunpack.c.l.b16 %v241
        %v490 = vunpack.c.l.b16 %v242
        %v491 = vunpack.c.l.b16 %v243
        %v492 = vunpack.c.l.b16 %v244
        %v493 = vunpack.c.l.b16 %v245
        %v494 = vunpack.c.l.b16 %v246
        %v495 = vunpack.c.l.b16 %v247
        %v496 = vunpack.c.l.b16 %v248
        %v497 = vunpack.c.l.b16 %v249
        %v498 = vunpack.c.l.b16 %v250
        %v499 = vunpack.c.l.b16 %v251
        %v500 = vunpack.c.l.b16 %v252
        %v501 = vunpack.c.l.b16 %v253
        %v502 = vunpack.c.l.b16 %v254
        %v503 = vunpack.c.l.b16 %v255
        %v504 = vunpack.c.l.b16 %v256
        %v505 = vunpack.c.l.b16 %v257
        %v506 = vunpack.c.l.b16 %v258
        %v507 = vunpack.c.l.b16 %v259
        %v508 = vunpack.c.l.b16 %v260
        %v509 = vunpack.c.l.b16 %v261
        %v510 = vunpack.c.l.b16 %v262
        %v511 = vunpack.c.l.b16 %v263
        %v512 = vunpack.c.l.b16 %v264
        %v513 = vunpack.c.l.b16 %v265
        %v514 = vunpack.c.l.b16 %v266
        %v515 = vunpack.c.l.b16 %v267
        %v516 = vunpack.c.l.b16 %v268
        %v517 = vunpack.c.l.b16 %v269
        %v518 = vunpack.c.l.b16 %v270
        %v519 = vunpack.c.l.b16 %v271
        %v520 = vunpack.c.l.b16 %v272
        %v521 = vunpack.c.l.b16 %v273
        %v522 = vunpack.c.l.b16 %v274
        %v523 = vunpack.c.l.b16 %v275
        %v524 = vunpack.c.l.b16 %v276
        %v525 = vunpack.c.l.b16 %v277
        %v526 = vunpack.c.l.b16 %v278
        %v527 = vunpack.c.l.b16 %v279
        %v528 = vunpack.c.l.b16 %v280
        %v529 = vunpack.c.l.b16 %v281
        %v530 = vunpack.c.l.b16 %v282
        %v531 = vunpack.c.l.b16 %v283
        %v532 = vunpack.c.l.b16 %v284
        %v533 = vunpack.c.l.b16 %v285
        %v534 = vunpack.c.l.b16 %v286
        %v535 = vunpack.c.l.b16 %v287
        %v536 = vunpack.c.l.b16 %v288
        %v537 = vunpack.c.l.b16 %v289
        %v538 = vunpack.c.l.b16 %v290
        %v539 = vunpack.c.l.b16 %v291
        %v540 = vunpack.c.l.b16 %v292
        %v541 = vunpack.c.l.b16 %v293
        %v542 = vunpack.c.l.b16 %v294
        %v543 = vunpack.c.l.b16 %v295
        %v544 = vunpack.c.l.b16 %v296
        %v545 = vpack.c.b16 %v474, %v473
        %v546 = vpack.c.b16 %v476, %v475
        %v547 = vpack.c.b16 %v478, %v477
        %v548 = vpack.c.b16 %v480, %v479
        %v549 = vpack.c.b16 %v482, %v481
        %v550 = vpack.c.b16 %v484, %v483
        %v551 = vpack.c.b16 %v486, %v485
        %v552 = vpack.c.b16 %v488, %v487
        %v553 = vpack.c.b16 %v490, %v489
        %v554 = vpack.c.b16 %v492, %v491
        %v555 = vpack.c.b16 %v494, %v493
        %v556 = vpack.c.b16 %v496, %v495
        %v557 = vpack.c.b16 %v498, %v497
        %v558 = vpack.c.b16 %v500, %v499
        %v559 = vpack.c.b16 %v502, %v501
        %v560 = vpack.c.b16 %v504, %v503
        %v561 = vpack.c.b16 %v506, %v505
        %v562 = vpack.c.b16 %v508, %v507
        %v563 = vpack.c.b16 %v510, %v509
        %v564 = vpack.c.b16 %v512, %v511
        %v565 = vpack.c.b16 %v514, %v513
        %v566 = vpack.c.b16 %v516, %v515
        %v567 = vpack.c.b16 %v518, %v517
        %v568 = vpack.c.b16 %v520, %v519
        %v569 = vpack.c.b16 %v522, %v521
        %v570 = vpack.c.b16 %v524, %v523
        %v571 = vpack.c.b16 %v526, %v525
        %v572 = vpack.c.b16 %v528, %v527
        %v573 = vpack.c.b16 %v530, %v529
        %v574 = vpack.c.b16 %v532, %v531
        %v575 = vpack.c.b16 %v534, %v533
        %v576 = vpack.c.b16 %v536, %v535
        %v577 = vpack.c.b16 %v538, %v537
        %v578 = vpack.c.b16 %v540, %v539
        %v579 = vpack.c.b16 %v542, %v541
        %v580 = vpack.c.b16 %v544, %v543
        %vm617 = vcmask 523264
        %v619 = vsel %vm617, %v369, 0
        %v622 = vsel %vm617, %v374, 0
        %v625 = vsel %vm617, %v379, 0
        %v628 = vsel %vm617, %v384, 0
        %630 = vmatpush.bf16.msra.mxu0 %v552
        %631 = vmatpush.bf16.msra.mxu0 %v551
        %632 = vmatpush.bf16.msra.mxu0 %v550
        %633 = vmatpush.bf16.msra.mxu0 %v549
        %634 = vmatpush.bf16.msra.mxu0 %v548
        %635 = vmatpush.bf16.msra.mxu0 %v547
        %636 = vmatpush.bf16.msra.mxu0 %v546
        %637 = vmatpush.bf16.msra.mxu0 %v545
        %638 = vmatmul.bf16.gmra.mxu0 %v365
        %v639 = vpop.f32.mrf.mxu0
        %v640 = vadd.f32 %v299, %v639
        %v641 = vpop.f32.mrf.mxu0
        %v642 = vadd.f32 %v299, %v641
        %643 = vmatmul.bf16.gmra.mxu0 %v370
        %v644 = vpop.f32.mrf.mxu0
        %v645 = vadd.f32 %v299, %v644
        %v646 = vpop.f32.mrf.mxu0
        %v647 = vadd.f32 %v299, %v646
        %648 = vmatmul.bf16.gmra.mxu0 %v375
        %v649 = vpop.f32.mrf.mxu0
        %v650 = vadd.f32 %v299, %v649
        %v651 = vpop.f32.mrf.mxu0
        %v652 = vadd.f32 %v299, %v651
        %653 = vmatmul.bf16.gmra.mxu0 %v380
        %v654 = vpop.f32.mrf.mxu0
        %v655 = vadd.f32 %v299, %v654
        %v656 = vpop.f32.mrf.mxu0
        %v657 = vadd.f32 %v299, %v656
        %658 = vdwg.mxu0
        %659 = vmatpush.bf16.msra.mxu0 %v560
        %660 = vmatpush.bf16.msra.mxu0 %v559
        %661 = vmatpush.bf16.msra.mxu0 %v558
        %662 = vmatpush.bf16.msra.mxu0 %v557
        %663 = vmatpush.bf16.msra.mxu0 %v556
        %664 = vmatpush.bf16.msra.mxu0 %v555
        %665 = vmatpush.bf16.msra.mxu0 %v554
        %666 = vmatpush.bf16.msra.mxu0 %v553
        %667 = vmatmul.bf16.gmra.mxu0 %v366
        %v668 = vpop.f32.mrf.mxu0
        %v669 = vadd.f32 %v640, %v668
        %v670 = vpop.f32.mrf.mxu0
        %v671 = vadd.f32 %v642, %v670
        %672 = vmatmul.bf16.gmra.mxu0 %v371
        %v673 = vpop.f32.mrf.mxu0
        %v674 = vadd.f32 %v645, %v673
        %v675 = vpop.f32.mrf.mxu0
        %v676 = vadd.f32 %v647, %v675
        %677 = vmatmul.bf16.gmra.mxu0 %v376
        %v678 = vpop.f32.mrf.mxu0
        %v679 = vadd.f32 %v650, %v678
        %v680 = vpop.f32.mrf.mxu0
        %v681 = vadd.f32 %v652, %v680
        %682 = vmatmul.bf16.gmra.mxu0 %v381
        %v683 = vpop.f32.mrf.mxu0
        %v684 = vadd.f32 %v655, %v683
        %v685 = vpop.f32.mrf.mxu0
        %v686 = vadd.f32 %v657, %v685
        %687 = vdwg.mxu0
        %688 = vmatpush.bf16.msra.mxu0 %v568
        %689 = vmatpush.bf16.msra.mxu0 %v567
        %690 = vmatpush.bf16.msra.mxu0 %v566
        %691 = vmatpush.bf16.msra.mxu0 %v565
        %692 = vmatpush.bf16.msra.mxu0 %v564
        %693 = vmatpush.bf16.msra.mxu0 %v563
        %694 = vmatpush.bf16.msra.mxu0 %v562
        %695 = vmatpush.bf16.msra.mxu0 %v561
        %696 = vmatmul.bf16.gmra.mxu0 %v367
        %v697 = vpop.f32.mrf.mxu0
        %v698 = vadd.f32 %v669, %v697
        %v699 = vpop.f32.mrf.mxu0
        %v700 = vadd.f32 %v671, %v699
        %701 = vmatmul.bf16.gmra.mxu0 %v372
        %v702 = vpop.f32.mrf.mxu0
        %v703 = vadd.f32 %v674, %v702
        %v704 = vpop.f32.mrf.mxu0
        %v705 = vadd.f32 %v676, %v704
        %706 = vmatmul.bf16.gmra.mxu0 %v377
        %v707 = vpop.f32.mrf.mxu0
        %v708 = vadd.f32 %v679, %v707
        %v709 = vpop.f32.mrf.mxu0
        %v710 = vadd.f32 %v681, %v709
        %711 = vmatmul.bf16.gmra.mxu0 %v382
        %v712 = vpop.f32.mrf.mxu0
        %v713 = vadd.f32 %v684, %v712
        %v714 = vpop.f32.mrf.mxu0
        %v715 = vadd.f32 %v686, %v714
        %716 = vdwg.mxu0
        %717 = vmatpush.bf16.msra.mxu0 %v576
        %718 = vmatpush.bf16.msra.mxu0 %v575
        %719 = vmatpush.bf16.msra.mxu0 %v574
        %720 = vmatpush.bf16.msra.mxu0 %v573
        %721 = vmatpush.bf16.msra.mxu0 %v572
        %722 = vmatpush.bf16.msra.mxu0 %v571
        %723 = vmatpush.bf16.msra.mxu0 %v570
        %724 = vmatpush.bf16.msra.mxu0 %v569
        %725 = vmatmul.bf16.gmra.mxu0 %v368
        %v726 = vpop.f32.mrf.mxu0
        %v727 = vadd.f32 %v698, %v726
        %v728 = vpop.f32.mrf.mxu0
        %v729 = vadd.f32 %v700, %v728
        %730 = vmatmul.bf16.gmra.mxu0 %v373
        %v731 = vpop.f32.mrf.mxu0
        %v732 = vadd.f32 %v703, %v731
        %v733 = vpop.f32.mrf.mxu0
        %v734 = vadd.f32 %v705, %v733
        %735 = vmatmul.bf16.gmra.mxu0 %v378
        %v736 = vpop.f32.mrf.mxu0
        %v737 = vadd.f32 %v708, %v736
        %v738 = vpop.f32.mrf.mxu0
        %v739 = vadd.f32 %v710, %v738
        %740 = vmatmul.bf16.gmra.mxu0 %v383
        %v741 = vpop.f32.mrf.mxu0
        %v742 = vadd.f32 %v713, %v741
        %v743 = vpop.f32.mrf.mxu0
        %v744 = vadd.f32 %v715, %v743
        %745 = vdwg.mxu0
        %746 = vmatpush.bf16.msra.mxu0 0
        %747 = vmatpush.bf16.msra.mxu0 0
        %748 = vmatpush.bf16.msra.mxu0 0
        %749 = vmatpush.bf16.msra.mxu0 0
        %750 = vmatpush.bf16.msra.mxu0 %v580
        %751 = vmatpush.bf16.msra.mxu0 %v579
        %752 = vmatpush.bf16.msra.mxu0 %v578
        %753 = vmatpush.bf16.msra.mxu0 %v577
        %754 = vmatmul.bf16.gmra.mxu0 %v619
        %v755 = vpop.f32.mrf.mxu0
        %v756 = vadd.f32 %v727, %v755
        %v757 = vpop.f32.mrf.mxu0
        %v758 = vadd.f32 %v729, %v757
        %759 = vmatmul.bf16.gmra.mxu0 %v622
        %v760 = vpop.f32.mrf.mxu0
        %v761 = vadd.f32 %v732, %v760
        %v762 = vpop.f32.mrf.mxu0
        %v763 = vadd.f32 %v734, %v762
        %764 = vmatmul.bf16.gmra.mxu0 %v625
        %v765 = vpop.f32.mrf.mxu0
        %v766 = vadd.f32 %v737, %v765
        %v767 = vpop.f32.mrf.mxu0
        %v768 = vadd.f32 %v739, %v767
        %769 = vmatmul.bf16.gmra.mxu0 %v628
        %v770 = vpop.f32.mrf.mxu0
        %v771 = vadd.f32 %v742, %v770
        %v772 = vpop.f32.mrf.mxu0
        %v773 = vadd.f32 %v744, %v772
        %774 = vdwg.mxu0
        %v775 = vmax.f32 %v756, 0.0
        %v776 = vmax.f32 %v758, 0.0
        %v777 = vmax.f32 %v761, 0.0
        %v778 = vmax.f32 %v763, 0.0
        %v779 = vmax.f32 %v766, 0.0
        %v780 = vmax.f32 %v768, 0.0
        %v781 = vmax.f32 %v771, 0.0
        %v782 = vmax.f32 %v773, 0.0
        %783 = vst.msk [vmem:[%s177] sm:$0xff] %vm617, %v775
        %784 = vst.msk [vmem:[%s177 + $0x8] sm:$0xff] %vm617, %v776
        %785 = vst.msk [vmem:[%s177 + $0x10] sm:$0xff] %vm617, %v777
        %786 = vst.msk [vmem:[%s177 + $0x18] sm:$0xff] %vm617, %v778
        %787 = vst.msk [vmem:[%s177 + $0x20] sm:$0xff] %vm617, %v779
        %788 = vst.msk [vmem:[%s177 + $0x28] sm:$0xff] %vm617, %v780
        %789 = vst.msk [vmem:[%s177 + $0x30] sm:$0xff] %vm617, %v781
        %790 = vst.msk [vmem:[%s177 + $0x38] sm:$0xff] %vm617, %v782
        %s791 = sand.u32 %s90, 1
        %s792 = sand.u32 %s90, 1
        %s793 = smul.addr %s792, 64
        %s794 = scalar_lea.vmem [#allocation2], %s793
        // Predicated region
        $region33: #{encoder_forward.5} parent=31 // pred_check
          %p795 = pneg %p100
        $region34: #{encoder_forward.5} parent=31 // pred_check_branch
          %797 = sbr.rel (%p795) target = $region36
        $region35: #{encoder_forward.5} parent=31 // pred_region
          %s798 = smul.u32 8, %s14
          %s799 = ssub.s32 31, %s798
          %p800 = scmp.lt.s32.totalorder %s799, 8
          %s801 = scalar_select %p800, %s799, 8
          %s802 = smul.u32 8, %s801
          %p803 = scmp.ne.s32.totalorder 0, %s802
          %s804 = smul.addr %s798, 8
          %s805 = scalar_lea.vmem %s3, %s804
          // Predicated region
          $region37: #{encoder_forward.5} parent=35 // pred_check
            %p806 = pneg %p803
          $region38: #{encoder_forward.5} parent=35 // pred_check_branch
            %808 = sbr.rel (%p806) target = $region40
          $region39: #{encoder_forward.5} parent=35 // pred_region
            // Predicated region
            $region41: #{encoder_forward.5} parent=39 // pred_check
              _
            $region42: #{encoder_forward.5} parent=39 // pred_check_branch
              %810 = sbr.rel (0) target = $region44
            $region43: #{encoder_forward.5} parent=39 // pred_region
              // Predicated region
              $region63: #{encoder_forward.5} parent=43 // pred_check
                _
              $region64: #{encoder_forward.5} parent=43 // pred_check_branch
                %874 = sbr.rel (0) target = $region66
              $region65: #{encoder_forward.5} parent=43 // pred_region
                %s875 = sshrl.u32 %s801, 3
                // While loop
                $region67: #{encoder_forward.5} parent=65 // loop_pre_header
                  _
                $region68: #{encoder_forward.5} parent=65 // loop_header
                  %s877 = sphi 0, %s879
                  %p878 = scmp.ge.s32.totalorder %s877, %s875
                  %s882 = sphi 0, %s903
                  %s883 = sphi %s794, %s906
                  %s884 = sphi %s805, %s907
                $region69: #{encoder_forward.5} parent=65 // loop_header_branch
                  %881 = sbr.rel (%p878) target = $region73
                $region70: #{encoder_forward.5} parent=65 // loop_body
                  %v885 = vld [vmem:[%s883] sm:$0xff]
                  %886 = vst [vmem:[%s884] sm:$0xff] %v885
                  %v887 = vld [vmem:[%s883 + $0x8] sm:$0xff]
                  %888 = vst [vmem:[%s884 + $0x8] sm:$0xff] %v887
                  %v889 = vld [vmem:[%s883 + $0x10] sm:$0xff]
                  %890 = vst [vmem:[%s884 + $0x10] sm:$0xff] %v889
                  %v891 = vld [vmem:[%s883 + $0x18] sm:$0xff]
                  %892 = vst [vmem:[%s884 + $0x18] sm:$0xff] %v891
                  %v893 = vld [vmem:[%s883 + $0x20] sm:$0xff]
                  %894 = vst [vmem:[%s884 + $0x20] sm:$0xff] %v893
                  %v895 = vld [vmem:[%s883 + $0x28] sm:$0xff]
                  %896 = vst [vmem:[%s884 + $0x28] sm:$0xff] %v895
                  %v897 = vld [vmem:[%s883 + $0x30] sm:$0xff]
                  %898 = vst [vmem:[%s884 + $0x30] sm:$0xff] %v897
                  %v899 = vld [vmem:[%s883 + $0x38] sm:$0xff]
                  %900 = vst [vmem:[%s884 + $0x38] sm:$0xff] %v899
                  %s901 = sadd.s32 1, %s882
                  %p902 = scmp.ge.s32.totalorder %s901, %s875
                  %s903 = scalar_select %p902, 0, %s901
                  %s904 = smul.u32 %s903, 64
                  %s905 = smul.u32 %s903, 64
                  %s906 = scalar_lea.vmem %s794, %s904 [#allocation2]
                  %s907 = scalar_lea.vmem %s805, %s905
                $region71: #{encoder_forward.5} parent=65 // loop_footer
                  %s879 = sadd.s32 %s877, 1
                $region72: #{encoder_forward.5} parent=65 // loop_footer_branch
                  %876 = sbr.rel target = $region68
                $region73: #{encoder_forward.5} parent=65 // loop_exit
                  _
                %s908 = sshrl.u32 %s801, 3
                %s909 = sand.u32 %s801, 7
                %s910 = smul.u32 %s908, 8
                %s911 = smul.u32 8, %s910
                %s912 = scalar_lea.vmem %s794, %s911 [#allocation2]
                %s913 = smul.u32 8, %s910
                %s914 = scalar_lea.vmem %s805, %s913
                // While loop
                $region74: #{encoder_forward.5} parent=65 // loop_pre_header
                  _
                $region75: #{encoder_forward.5} parent=65 // loop_header
                  %s916 = sphi 0, %s918
                  %p917 = scmp.ge.s32.totalorder %s916, %s909
                  %s921 = sphi 0, %s928
                  %s922 = sphi %s912, %s931
                  %s923 = sphi %s914, %s932
                $region76: #{encoder_forward.5} parent=65 // loop_header_branch
                  %920 = sbr.rel (%p917) target = $region80
                $region77: #{encoder_forward.5} parent=65 // loop_body
                  %v924 = vld [vmem:[%s922] sm:$0xff]
                  %925 = vst [vmem:[%s923] sm:$0xff] %v924
                  %s926 = sadd.s32 1, %s921
                  %p927 = scmp.ge.s32.totalorder %s926, %s909
                  %s928 = scalar_select %p927, 0, %s926
                  %s929 = smul.u32 %s928, 8
                  %s930 = smul.u32 %s928, 8
                  %s931 = scalar_lea.vmem %s912, %s929 [#allocation2]
                  %s932 = scalar_lea.vmem %s914, %s930
                $region78: #{encoder_forward.5} parent=65 // loop_footer
                  %s918 = sadd.s32 %s916, 1
                $region79: #{encoder_forward.5} parent=65 // loop_footer_branch
                  %915 = sbr.rel target = $region75
                $region80: #{encoder_forward.5} parent=65 // loop_exit
                  _
              $region66: #{encoder_forward.5} parent=43 // pred_fallthru
                _
              // Predicated region
              $region81: #{encoder_forward.5} parent=43 // pred_check
                _
              $region82: #{encoder_forward.5} parent=43 // pred_check_branch
                %934 = sbr.rel target = $region84
              $region83: #{encoder_forward.5} parent=43 // pred_region
                _
              $region84: #{encoder_forward.5} parent=43 // pred_fallthru
                _
            $region44: #{encoder_forward.5} parent=39 // pred_fallthru
              _
            // Predicated region
            $region45: #{encoder_forward.5} parent=39 // pred_check
              _
            $region46: #{encoder_forward.5} parent=39 // pred_check_branch
              %812 = sbr.rel target = $region48
            $region47: #{encoder_forward.5} parent=39 // pred_region
              %s814 = ssub.s32 256, 1
              %s815 = sshrl.u32 %s801, 3
              // While loop
              $region49: #{encoder_forward.5} parent=47 // loop_pre_header
                _
              $region50: #{encoder_forward.5} parent=47 // loop_header
                %s817 = sphi 0, %s819
                %p818 = scmp.ge.s32.totalorder %s817, %s815
                %s822 = sphi 0, %s843
                %s823 = sphi %s794, %s846
                %s824 = sphi %s805, %s847
              $region51: #{encoder_forward.5} parent=47 // loop_header_branch
                %821 = sbr.rel (%p818) target = $region55
              $region52: #{encoder_forward.5} parent=47 // loop_body
                %v825 = vld [vmem:[%s823] sm:%s814]
                %826 = vst [vmem:[%s824] sm:%s814] %v825
                %v827 = vld [vmem:[%s823 + $0x8] sm:%s814]
                %828 = vst [vmem:[%s824 + $0x8] sm:%s814] %v827
                %v829 = vld [vmem:[%s823 + $0x10] sm:%s814]
                %830 = vst [vmem:[%s824 + $0x10] sm:%s814] %v829
                %v831 = vld [vmem:[%s823 + $0x18] sm:%s814]
                %832 = vst [vmem:[%s824 + $0x18] sm:%s814] %v831
                %v833 = vld [vmem:[%s823 + $0x20] sm:%s814]
                %834 = vst [vmem:[%s824 + $0x20] sm:%s814] %v833
                %v835 = vld [vmem:[%s823 + $0x28] sm:%s814]
                %836 = vst [vmem:[%s824 + $0x28] sm:%s814] %v835
                %v837 = vld [vmem:[%s823 + $0x30] sm:%s814]
                %838 = vst [vmem:[%s824 + $0x30] sm:%s814] %v837
                %v839 = vld [vmem:[%s823 + $0x38] sm:%s814]
                %840 = vst [vmem:[%s824 + $0x38] sm:%s814] %v839
                %s841 = sadd.s32 1, %s822
                %p842 = scmp.ge.s32.totalorder %s841, %s815
                %s843 = scalar_select %p842, 0, %s841
                %s844 = smul.u32 %s843, 64
                %s845 = smul.u32 %s843, 64
                %s846 = scalar_lea.vmem %s794, %s844 [#allocation2]
                %s847 = scalar_lea.vmem %s805, %s845
              $region53: #{encoder_forward.5} parent=47 // loop_footer
                %s819 = sadd.s32 %s817, 1
              $region54: #{encoder_forward.5} parent=47 // loop_footer_branch
                %816 = sbr.rel target = $region50
              $region55: #{encoder_forward.5} parent=47 // loop_exit
                _
              %s848 = sshrl.u32 %s801, 3
              %s849 = sand.u32 %s801, 7
              %s850 = smul.u32 %s848, 8
              %s851 = smul.u32 8, %s850
              %s852 = scalar_lea.vmem %s794, %s851 [#allocation2]
              %s853 = smul.u32 8, %s850
              %s854 = scalar_lea.vmem %s805, %s853
              // While loop
              $region56: #{encoder_forward.5} parent=47 // loop_pre_header
                _
              $region57: #{encoder_forward.5} parent=47 // loop_header
                %s856 = sphi 0, %s858
                %p857 = scmp.ge.s32.totalorder %s856, %s849
                %s861 = sphi 0, %s868
                %s862 = sphi %s852, %s871
                %s863 = sphi %s854, %s872
              $region58: #{encoder_forward.5} parent=47 // loop_header_branch
                %860 = sbr.rel (%p857) target = $region62
              $region59: #{encoder_forward.5} parent=47 // loop_body
                %v864 = vld [vmem:[%s862] sm:%s814]
                %865 = vst [vmem:[%s863] sm:%s814] %v864
                %s866 = sadd.s32 1, %s861
                %p867 = scmp.ge.s32.totalorder %s866, %s849
                %s868 = scalar_select %p867, 0, %s866
                %s869 = smul.u32 %s868, 8
                %s870 = smul.u32 %s868, 8
                %s871 = scalar_lea.vmem %s852, %s869 [#allocation2]
                %s872 = scalar_lea.vmem %s854, %s870
              $region60: #{encoder_forward.5} parent=47 // loop_footer
                %s858 = sadd.s32 %s856, 1
              $region61: #{encoder_forward.5} parent=47 // loop_footer_branch
                %855 = sbr.rel target = $region57
              $region62: #{encoder_forward.5} parent=47 // loop_exit
                _
            $region48: #{encoder_forward.5} parent=39 // pred_fallthru
              _
          $region40: #{encoder_forward.5} parent=35 // pred_fallthru
            _
          %935 = vnop
        $region36: #{encoder_forward.5} parent=31 // pred_fallthru
          _
      $region32: #{encoder_forward.5} parent=5 // pred_fallthru
        _
      %p936 = scmp.le.s32.totalorder 2, %s9
      // Predicated region
      $region85: #{encoder_forward.5} parent=5 // pred_check
        %p937 = pneg %p936
      $region86: #{encoder_forward.5} parent=5 // pred_check_branch
        %939 = sbr.rel (%p937) target = $region88
      $region87: #{encoder_forward.5} parent=5 // pred_region
        %s940 = ssub.s32 %s9, 2
        // Predicated region
        $region89: #{encoder_forward.5} parent=87 // pred_check
          %p941 = pneg %p106
        $region90: #{encoder_forward.5} parent=87 // pred_check_branch
          %943 = sbr.rel (%p941) target = $region92
        $region91: #{encoder_forward.5} parent=87 // pred_region
          %s944 = sand.u32 %s91, 1
          %s945 = sand.u32 %s91, 1
          %s946 = smul.addr %s945, 64
          %s947 = scalar_lea.vmem [#allocation2], %s946
        $region92: #{encoder_forward.5} parent=87 // pred_fallthru
          _
      $region88: #{encoder_forward.5} parent=5 // pred_fallthru
        _
    $region6: #{encoder_forward.5} parent=1 // loop_footer
      %s13 = sadd.s32 1, %s9
    $region7: #{encoder_forward.5} parent=1 // loop_footer_branch
      %8 = sbr.rel target = $region3
    $region8: #{encoder_forward.5} parent=1 // loop_exit
      _

</llo_original>
